<compile_context>
chip_gen: v6e
topology: v6e:2x2x1
jax: 0.10.0
libtpu: 0.0.40
codegen_flags: <defaults>
</compile_context>

<pallas_src>
import functools

import jax
import jax.numpy as jnp
from jax.experimental import pallas as pl
from jax.experimental.pallas import tpu as pltpu


def _fe_kernel(patches_ref, wpe_ref, w1_ref, vecs_ref, b2_ref,
               x_ref, a_ref, *, tb, n, exact):
    """One grid step = `tb` batch elements = tb*n patch rows."""
    c = wpe_ref.shape[1]

    vecs = vecs_ref[...]                                              # (3, C) f32
    b_pe = vecs[0:1, :]
    b1 = vecs[1:2, :]
    w2 = vecs[2:3, :]

    # --- backbone: patch-embed conv as one (tb*n, K) @ (K, C) matmul ---
    p = patches_ref[...]                                              # (tb*n, K)
    feat = jnp.dot(p, wpe_ref[...],
                   preferred_element_type=jnp.float32) + b_pe         # (tb*n, C) f32

    # --- x = x / clamp(||x||_2 over channel dim, min=1e-8) ---
    # rsqrt(max(sumsq, 1e-16)) == 1 / clamp(sqrt(sumsq), 1e-8); rsqrt -> EUP.
    sumsq = jnp.sum(feat * feat, axis=-1, keepdims=True)              # (tb*n, 1)
    inv = jax.lax.rsqrt(jnp.maximum(sumsq, 1e-16))
    xn = feat * inv                                                   # (tb*n, C)
    x_ref[...] = xn                                                   # lane-dense store (C last)

    # --- MLP: Linear(C,C) -> LeakyReLU(0.01) -> Linear(C,1) ---
    h = jnp.dot(xn.astype(w1_ref.dtype), w1_ref[...],
                preferred_element_type=jnp.float32) + b1              # (tb*n, C) f32
    h = jnp.maximum(h, 0.01 * h)                                      # LeakyReLU, mul+max
    hw = h * w2                                                       # (tb*n, C)
    # Split the row dim into (tb, n) (n % 8 == 0 -> pure sublane regroup) so
    # the patch-softmax reduction is segmented per batch element.
    logits = jnp.sum(hw.reshape(tb, n, c), axis=-1) + b2_ref[0, 0]    # (tb, n)

    # --- softmax over the patch dimension, per batch element ---
    m = jnp.max(logits, axis=-1, keepdims=True)
    e = jnp.exp(logits - m)
    s = jnp.sum(e, axis=-1, keepdims=True)
    if exact:
        a_ref[...] = e / s                                            # exact f32 path
    else:
        a_ref[...] = e * pl.reciprocal(s, approx=True)                # EUP slot


def _num_tensorcores():
    """Best-effort TensorCores-per-chip (2 on v7x and megacore v4/v5p, else 1).
    Only used to pick the grid length; wrong answers are harmless."""
    try:
        kind = jax.devices()[0].device_kind.lower()
    except Exception:
        return 1
    if any(t in kind for t in ("v7", "tpu7", "v4", "v5p")):
        return 2
    return 1


def _pick_tb(batch, n, k, c, n_cores):
    """Pick batch-elements-per-grid-step.

    Rows-per-step is bounded only by a conservative VMEM budget for the
    double-buffered blocks (patches bf16 in, x f32 out, a f32 out); within
    that, single-TC chips take the whole batch in one step, dual-TC chips keep
    the grid length a multiple of the core count so every core gets a block.
    """
    budget = 16 * 1024 * 1024                       # well under v7x's 32 MiB scoped default
    per_row = 2 * (k * 2 + c * 4 + 4)               # double-buffered in + outs, bytes/row
    max_rows = max(n, budget // per_row)
    divs = [d for d in range(1, batch + 1) if batch % d == 0 and d * n <= max_rows]
    if not divs:
        return 1
    if n_cores > 1:
        even = [d for d in divs if (batch // d) % n_cores == 0]
        if even:
            return max(even)
    return max(divs)


def feature_extractor_forward(x_nchw, params, *, patch=4, tb=None,
                              matmul_dtype=jnp.bfloat16):
    """x_nchw: (B, Cin, H, W) float32.  Returns (x, a) = ((B,C,N), (B,N))."""
    B, Cin, H, W = x_nchw.shape
    P = patch
    Hp, Wp = H // P, W // P
    N = Hp * Wp
    K = Cin * P * P
    C = params["w_pe"].shape[1]

    if tb is None:
        tb = _pick_tb(B, N, K, C, _num_tensorcores())
    if B % tb != 0:
        raise ValueError("tb must divide the batch size")
    rows = tb * N                                   # matmul M dimension per step

    # glue: extract non-overlapping P x P patches -> (B*N, K); patch vector
    # ordering (Cin, P, P) matches the conv-weight reshape in make_params.
    # TODO(synk): in-kernel patch extraction would need a rank-6 VMEM
    # transpose; left wrapper-side (see header).
    patches = x_nchw.reshape(B, Cin, Hp, P, Wp, P)
    patches = patches.transpose(0, 2, 4, 1, 3, 5).reshape(B * N, K)

    # Matmul operands in matmul_dtype (bf16 by default on all chip gens);
    # accumulation + all elementwise math stay f32 inside the kernel.
    patches = patches.astype(matmul_dtype)
    w_pe = params["w_pe"].astype(matmul_dtype)
    w1 = params["w1"].astype(matmul_dtype)

    # Pack the three (1, C) f32 row vectors into one (3, C) input: one
    # BlockSpec / one DMA instead of three.
    vecs = jnp.concatenate([params["b_pe"], params["b1"], params["w2"]], axis=0)

    exact = (matmul_dtype == jnp.float32)

    kernel = pl.pallas_call(
        functools.partial(_fe_kernel, tb=tb, n=N, exact=exact),
        out_shape=(
            jax.ShapeDtypeStruct((B * N, C), jnp.float32),   # x, lane-dense in C
            jax.ShapeDtypeStruct((B, N), jnp.float32),       # a
        ),
        grid_spec=pltpu.PrefetchScalarGridSpec(
            num_scalar_prefetch=0,
            grid=(B // tb,),
            in_specs=[
                pl.BlockSpec((rows, K), lambda g: (g, 0)),   # patches (batch-blocked)
                pl.BlockSpec((K, C), lambda g: (0, 0)),      # w_pe
                pl.BlockSpec((C, C), lambda g: (0, 0)),      # w1
                pl.BlockSpec((3, C), lambda g: (0, 0)),      # [b_pe; b1; w2]
                pl.BlockSpec(memory_space=pltpu.MemorySpace.SMEM),  # b2 scalar
            ],
            out_specs=[
                pl.BlockSpec((rows, C), lambda g: (g, 0)),
                pl.BlockSpec((tb, N), lambda g: (g, 0)),
            ],
        ),
        compiler_params=pltpu.CompilerParams(
            dimension_semantics=("parallel",),
            vmem_limit_bytes=32 * 1024 * 1024,               # explicit; safe on v7x's 64 MiB
        ),
    )
    x_flat, a = kernel(patches, w_pe, w1, vecs, params["b2"])
    # Wrapper-side layout plumbing: (B*N, C) -> (B, C, N) to match PyTorch.
    # TODO(synk): skippable if the consumer accepts (B, N, C).
    x_out = jnp.swapaxes(x_flat.reshape(B, N, C), 1, 2)
    return x_out, a


def _reference(x_nchw, params, *, patch=4):
    """Pure-JAX f32 reference of the same forward pass (sanity check)."""
    B, Cin, H, W = x_nchw.shape
    P = patch
    Hp, Wp = H // P, W // P
    N = Hp * Wp
    K = Cin * P * P
    patches = x_nchw.reshape(B, Cin, Hp, P, Wp, P)
    patches = patches.transpose(0, 2, 4, 1, 3, 5).reshape(B, N, K)
    feat = patches @ params["w_pe"] + params["b_pe"]          # (B, N, C)
    x = jnp.swapaxes(feat, 1, 2)                              # (B, C, N)
    nrm = jnp.maximum(jnp.linalg.norm(x, axis=1, keepdims=True), 1e-8)
    x = x / nrm
    xt = jnp.swapaxes(x, 1, 2)                                # (B, N, C)
    h = xt @ params["w1"] + params["b1"]
    h = jnp.where(h >= 0, h, 0.01 * h)
    logits = jnp.sum(h * params["w2"], axis=-1) + params["b2"][0, 0]  # (B, N)
    a = jax.nn.softmax(logits, axis=1)
    return x, a


def make_params(key, cin, channel, patch):
    K = cin * patch * patch
    ks = jax.random.split(key, 6)
    scale_pe = 1.0 / jnp.sqrt(K)
    scale_c = 1.0 / jnp.sqrt(channel)
    # conv weight (Cout, Cin, P, P) flattened to (K, Cout) for the matmul form
    w_conv = jax.random.normal(ks[0], (channel, cin, patch, patch),
                               jnp.float32) * scale_pe
    return {
        "w_pe": w_conv.reshape(channel, K).T,                       # (K, C)
        "b_pe": (jax.random.normal(ks[1], (1, channel), jnp.float32)
                 * scale_pe),
        "w1": jax.random.normal(ks[2], (channel, channel), jnp.float32) * scale_c,
        "b1": jax.random.normal(ks[3], (1, channel), jnp.float32) * scale_c,
        "w2": jax.random.normal(ks[4], (1, channel), jnp.float32) * scale_c,
        "b2": jax.random.normal(ks[5], (1, 1), jnp.float32) * scale_c,
    }


if __name__ == "__main__":
    key = jax.random.PRNGKey(0)
    k_x, k_p = jax.random.split(key)

    B, Cin, H, W = 16, 4, 16, 16          # NCHW input, as in PyTorch
    patch = 4
    channel = 32                          # config.channel
    N = (H // patch) * (W // patch)       # 16 patches -> B*N = 256 rows

    x_in = jax.random.normal(k_x, (B, Cin, H, W), jnp.float32)
    params = make_params(k_p, Cin, channel, patch)
    x_ref, a_ref = _reference(x_in, params, patch=patch)

    # f32 matmul path: exact check against the reference (auto tb / grid pick).
    fwd_f32 = jax.jit(functools.partial(feature_extractor_forward, patch=patch,
                                        matmul_dtype=jnp.float32))
    x32, a32 = fwd_f32(x_in, params)
    jax.block_until_ready((x32, a32))
    assert x32.shape == (B, channel, N)
    assert a32.shape == (B, N)
    assert jnp.allclose(x32, x_ref, atol=1e-5, rtol=1e-5)
    assert jnp.allclose(a32, a_ref, atol=1e-5, rtol=1e-5)

    # bf16 matmul path (default, recommended on v5e/v6e/v7x): relaxed tolerance.
    fwd_bf16 = jax.jit(functools.partial(feature_extractor_forward, patch=patch,
                                         matmul_dtype=jnp.bfloat16))
    x16, a16 = fwd_bf16(x_in, params)
    jax.block_until_ready((x16, a16))
    assert jnp.allclose(x16, x_ref, atol=3e-2, rtol=3e-2)
    assert jnp.allclose(a16, a_ref, atol=3e-2, rtol=3e-2)

    print("KERNEL_OK")
</pallas_src>

<mosaic_0001>
module attributes {stable_mosaic.version = 11 : i64} {
  func.func @_fe_kernel(%arg0: i32, %arg1: memref<256x64xf32, #tpu.memory_space<vmem>>, %arg2: memref<64x32xf32, #tpu.memory_space<vmem>>, %arg3: memref<32x32xf32, #tpu.memory_space<vmem>>, %arg4: memref<3x32xf32, #tpu.memory_space<vmem>>, %arg5: memref<1x1xf32, #tpu.memory_space<smem>>, %arg6: memref<256x32xf32, #tpu.memory_space<vmem>>, %arg7: memref<16x16xf32, #tpu.memory_space<vmem>>) attributes {dimension_semantics = [#tpu.dimension_semantics<parallel>], iteration_bounds = array<i64: 1>, scalar_prefetch = 0 : i64, scratch_operands = 0 : i64, tpu.core_type = #tpu.core_type<tc>, window_params = [{transform_indices = @transform_0, window_bounds = array<i64: 256, 64>}, {pipeline_mode = #tpu.pipeline_mode<synchronous>, transform_indices = @transform_1, window_bounds = array<i64: 64, 32>}, {pipeline_mode = #tpu.pipeline_mode<synchronous>, transform_indices = @transform_2, window_bounds = array<i64: 32, 32>}, {pipeline_mode = #tpu.pipeline_mode<synchronous>, transform_indices = @transform_3, window_bounds = array<i64: 3, 32>}, {transform_indices = @transform_4, window_bounds = array<i64: 1, 1>}, {transform_indices = @transform_5, window_bounds = array<i64: 256, 32>}, {transform_indices = @transform_6, window_bounds = array<i64: 16, 16>}]} {
    %c0 = arith.constant 0 : index
    %c0_0 = arith.constant 0 : index
    %0 = vector.load %arg4[%c0, %c0_0] : memref<3x32xf32, #tpu.memory_space<vmem>>, vector<3x32xf32>
    %1 = vector.extract_strided_slice %0 {offsets = [0, 0], sizes = [1, 32], strides = [1, 1]} : vector<3x32xf32> to vector<1x32xf32>
    %2 = vector.extract_strided_slice %0 {offsets = [1, 0], sizes = [1, 32], strides = [1, 1]} : vector<3x32xf32> to vector<1x32xf32>
    %3 = vector.extract_strided_slice %0 {offsets = [2, 0], sizes = [1, 32], strides = [1, 1]} : vector<3x32xf32> to vector<1x32xf32>
    %c0_1 = arith.constant 0 : index
    %c0_2 = arith.constant 0 : index
    %4 = vector.load %arg1[%c0_1, %c0_2] : memref<256x64xf32, #tpu.memory_space<vmem>>, vector<256x64xf32>
    %c0_3 = arith.constant 0 : index
    %c0_4 = arith.constant 0 : index
    %5 = vector.load %arg2[%c0_3, %c0_4] : memref<64x32xf32, #tpu.memory_space<vmem>>, vector<64x32xf32>
    %cst = arith.constant dense<0.000000e+00> : vector<256x32xf32>
    %6 = tpu.matmul %4, %5, %cst {dimension_numbers = #tpu.dot_dimension_numbers<[1], [0], [0], [1], [0, 0, 1, 1], [], []>} : vector<256x64xf32>, vector<64x32xf32>, vector<256x32xf32> -> vector<256x32xf32>
    %7 = vector.broadcast %1 : vector<1x32xf32> to vector<256x32xf32>
    %8 = arith.addf %6, %7 : vector<256x32xf32>
    %9 = arith.mulf %8, %8 : vector<256x32xf32>
    %cst_5 = arith.constant dense<0.000000e+00> : vector<256xf32>
    %10 = vector.multi_reduction <add>, %9, %cst_5 [1] : vector<256x32xf32> to vector<256xf32>
    %11 = vector.shape_cast %10 : vector<256xf32> to vector<256x1xf32>
    %cst_6 = arith.constant 1.000000e-16 : f32
    %12 = vector.broadcast %cst_6 : f32 to vector<256x1xf32>
    %13 = arith.maximumf %11, %12 : vector<256x1xf32>
    %14 = math.rsqrt %13 : vector<256x1xf32>
    %15 = vector.broadcast %14 : vector<256x1xf32> to vector<256x32xf32>
    %16 = arith.mulf %8, %15 : vector<256x32xf32>
    %c0_7 = arith.constant 0 : index
    %c0_8 = arith.constant 0 : index
    %17 = vector.load %arg6[%c0_7, %c0_8] : memref<256x32xf32, #tpu.memory_space<vmem>>, vector<256x32xf32>
    tpu.vector_store %arg6[%c0_7, %c0_8], %16 {strides = array<i32>} : memref<256x32xf32, #tpu.memory_space<vmem>>, vector<256x32xf32>,
    %c0_9 = arith.constant 0 : index
    %c0_10 = arith.constant 0 : index
    %18 = vector.load %arg3[%c0_9, %c0_10] : memref<32x32xf32, #tpu.memory_space<vmem>>, vector<32x32xf32>
    %cst_11 = arith.constant dense<0.000000e+00> : vector<256x32xf32>
    %19 = tpu.matmul %16, %18, %cst_11 {dimension_numbers = #tpu.dot_dimension_numbers<[1], [0], [0], [1], [0, 0, 1, 1], [], []>} : vector<256x32xf32>, vector<32x32xf32>, vector<256x32xf32> -> vector<256x32xf32>
    %20 = vector.broadcast %2 : vector<1x32xf32> to vector<256x32xf32>
    %21 = arith.addf %19, %20 : vector<256x32xf32>
    %cst_12 = arith.constant 0.00999999977 : f32
    %22 = vector.broadcast %cst_12 : f32 to vector<256x32xf32>
    %23 = arith.mulf %22, %21 : vector<256x32xf32>
    %24 = arith.maximumf %21, %23 : vector<256x32xf32>
    %25 = vector.broadcast %3 : vector<1x32xf32> to vector<256x32xf32>
    %26 = arith.mulf %24, %25 : vector<256x32xf32>
    %27 = vector.shape_cast %26 : vector<256x32xf32> to vector<16x16x32xf32>
    %cst_13 = arith.constant dense<0.000000e+00> : vector<16x16xf32>
    %28 = vector.multi_reduction <add>, %27, %cst_13 [2] : vector<16x16x32xf32> to vector<16x16xf32>
    %c0_14 = arith.constant 0 : index
    %c0_15 = arith.constant 0 : index
    %29 = memref.load %arg5[%c0_14, %c0_15] : memref<1x1xf32, #tpu.memory_space<smem>>
    %30 = vector.broadcast %29 : f32 to vector<16x16xf32>
    %31 = arith.addf %28, %30 : vector<16x16xf32>
    %cst_16 = arith.constant dense<0xFF800000> : vector<16xf32>
    %32 = vector.multi_reduction <maximumf>, %31, %cst_16 [1] : vector<16x16xf32> to vector<16xf32>
    %33 = vector.shape_cast %32 : vector<16xf32> to vector<16x1xf32>
    %34 = vector.broadcast %33 : vector<16x1xf32> to vector<16x16xf32>
    %35 = arith.subf %31, %34 : vector<16x16xf32>
    %36 = math.exp %35 : vector<16x16xf32>
    %cst_17 = arith.constant dense<0.000000e+00> : vector<16xf32>
    %37 = vector.multi_reduction <add>, %36, %cst_17 [1] : vector<16x16xf32> to vector<16xf32>
    %38 = vector.shape_cast %37 : vector<16xf32> to vector<16x1xf32>
    %39 = vector.broadcast %38 : vector<16x1xf32> to vector<16x16xf32>
    %40 = arith.divf %36, %39 : vector<16x16xf32>
    %c0_18 = arith.constant 0 : index
    %c0_19 = arith.constant 0 : index
    %41 = vector.load %arg7[%c0_18, %c0_19] : memref<16x16xf32, #tpu.memory_space<vmem>>, vector<16x16xf32>
    tpu.vector_store %arg7[%c0_18, %c0_19], %40 {strides = array<i32>} : memref<16x16xf32, #tpu.memory_space<vmem>>, vector<16x16xf32>,
    return
  }
  func.func @transform_0(%arg0: i32) -> (i32, i32) {
    %c0_i32 = arith.constant 0 : i32
    %c0_i32_0 = arith.constant 0 : i32
    return %arg0, %c0_i32 : i32, i32
  }
  func.func @transform_1(%arg0: i32) -> (i32, i32) {
    %c0_i32 = arith.constant 0 : i32
    %c0_i32_0 = arith.constant 0 : i32
    %c0_i32_1 = arith.constant 0 : i32
    return %c0_i32, %c0_i32_0 : i32, i32
  }
  func.func @transform_2(%arg0: i32) -> (i32, i32) {
    %c0_i32 = arith.constant 0 : i32
    %c0_i32_0 = arith.constant 0 : i32
    %c0_i32_1 = arith.constant 0 : i32
    return %c0_i32, %c0_i32_0 : i32, i32
  }
  func.func @transform_3(%arg0: i32) -> (i32, i32) {
    %c0_i32 = arith.constant 0 : i32
    %c0_i32_0 = arith.constant 0 : i32
    %c0_i32_1 = arith.constant 0 : i32
    return %c0_i32, %c0_i32_0 : i32, i32
  }
  func.func @transform_4(%arg0: i32) -> (i32, i32) {
    %c0_i32 = arith.constant 0 : i32
    %c0_i32_0 = arith.constant 0 : i32
    %c0_i32_1 = arith.constant 0 : i32
    return %c0_i32, %c0_i32_0 : i32, i32
  }
  func.func @transform_5(%arg0: i32) -> (i32, i32) {
    %c0_i32 = arith.constant 0 : i32
    %c0_i32_0 = arith.constant 0 : i32
    return %arg0, %c0_i32 : i32, i32
  }
  func.func @transform_6(%arg0: i32) -> (i32, i32) {
    %c0_i32 = arith.constant 0 : i32
    %c0_i32_0 = arith.constant 0 : i32
    return %arg0, %c0_i32 : i32, i32
  }
}

</mosaic_0001>

<llo_original>
// kernel: feature_extractor_forward.1
$region0: #{feature_extractor_forward.1}
  #allocation0 [shape = 'u32[]', space=smem, size = 0x4, offset = 0x4, fixed_abs, tag = 'smem constant byte address 0x4 - core index']
  #allocation1 [shape = 'u32[144,128]{1,0:T(1,128)}', space=vmem, size = 0x12000, scoped, tag = 'internal scratch']
  #allocation2 [shape = 'f32[1,1]{1,0:T(1,128)S(6)}', space=smem, size = 0x200, scoped, tag = 'scoped memory for feature_extractor_forward.1']
  %s0 = inlined_call_operand.vmem [shape: f32[256,64], index: 0, kind: input, shape index: {}]
  %s1 = inlined_call_operand.vmem [shape: f32[64,32], index: 1, kind: input, shape index: {}]
  %s2 = inlined_call_operand.vmem [shape: f32[32,32], index: 2, kind: input, shape index: {}]
  %s3 = inlined_call_operand.vmem [shape: f32[3,32], index: 3, kind: input, shape index: {}]
  %s4 = inlined_call_operand.<no memory space> [shape: f32[1,1], index: 4, kind: input, shape index: {}]
  %s5 = inlined_call_operand.hbm [shape: f32[256,32], index: 5, kind: output, shape index: {0}]
  %s6 = inlined_call_operand.hbm [shape: f32[16,16], index: 6, kind: output, shape index: {1}]
  %7 = xla_tuple %s5, %s6
  %s8 = sld [smem:[#allocation0]]
  $region38: #{feature_extractor_forward.1} parent=0
    _
  %s10 = ssub.s32 1, %s8
  %s11 = scalar_select 0, %s10, %s8
  %12 = sst [smem:[#allocation2]] %s4
  $region1: #{feature_extractor_forward.1} parent=0
    #allocation3 [shape = 'u8[131072]{0}', space=vmem, size = 0x20000, scoped, tag = 'output window, operand 0, single buffered']
    #allocation4 [shape = 's32[1]{0}', space=sflag, size = 0x4, scoped, tag = 'scoped memory for feature_extractor_forward.1']
    #allocation5 [shape = 'u8[8192]{0}', space=vmem, size = 0x2000, scoped, tag = 'output window, operand 1, single buffered']
    #allocation6 [shape = 's32[1]{0}', space=sflag, size = 0x4, scoped, tag = 'scoped memory for feature_extractor_forward.1']
    %13 = vsyncpa [#allocation4], 0
    %14 = vsyncpa [#allocation6], 0
    // Predicated region
    $region2: #{feature_extractor_forward.1} parent=1 // pred_check
      _
    $region3: #{feature_extractor_forward.1} parent=1 // pred_check_branch
      %16 = sbr.rel (0) target = $region5
    $region4: #{feature_extractor_forward.1} parent=1 // pred_region
      _
    $region5: #{feature_extractor_forward.1} parent=1 // pred_fallthru
      _
    // Predicated region
    $region6: #{feature_extractor_forward.1} parent=1 // pred_check
      _
    $region7: #{feature_extractor_forward.1} parent=1 // pred_check_branch
      %18 = sbr.rel (0) target = $region9
    $region8: #{feature_extractor_forward.1} parent=1 // pred_region
      _
    $region9: #{feature_extractor_forward.1} parent=1 // pred_fallthru
      _
    // Predicated region
    $region10: #{feature_extractor_forward.1} parent=1 // pred_check
      _
    $region11: #{feature_extractor_forward.1} parent=1 // pred_check_branch
      %20 = sbr.rel (0) target = $region13
    $region12: #{feature_extractor_forward.1} parent=1 // pred_region
      _
    $region13: #{feature_extractor_forward.1} parent=1 // pred_fallthru
      _
    // Predicated region
    $region14: #{feature_extractor_forward.1} parent=1 // pred_check
      _
    $region15: #{feature_extractor_forward.1} parent=1 // pred_check_branch
      %22 = sbr.rel (0) target = $region17
    $region16: #{feature_extractor_forward.1} parent=1 // pred_region
      _
    $region17: #{feature_extractor_forward.1} parent=1 // pred_fallthru
      _
    // Predicated region
    $region18: #{feature_extractor_forward.1} parent=1 // pred_check
      _
    $region19: #{feature_extractor_forward.1} parent=1 // pred_check_branch
      %24 = sbr.rel (0) target = $region21
    $region20: #{feature_extractor_forward.1} parent=1 // pred_region
      _
    $region21: #{feature_extractor_forward.1} parent=1 // pred_fallthru
      _
    %v25 = vld [vmem:[%s3] sm:$0x7]
    %v26 = vld [vmem:[%s0] sm:$0xff]
    %v27 = vld [vmem:[%s0 + $0x8] sm:$0xff]
    %v28 = vld [vmem:[%s0 + $0x10] sm:$0xff]
    %v29 = vld [vmem:[%s0 + $0x18] sm:$0xff]
    %v30 = vld [vmem:[%s0 + $0x20] sm:$0xff]
    %v31 = vld [vmem:[%s0 + $0x28] sm:$0xff]
    %v32 = vld [vmem:[%s0 + $0x30] sm:$0xff]
    %v33 = vld [vmem:[%s0 + $0x38] sm:$0xff]
    %v34 = vld [vmem:[%s0 + $0x40] sm:$0xff]
    %v35 = vld [vmem:[%s0 + $0x48] sm:$0xff]
    %v36 = vld [vmem:[%s0 + $0x50] sm:$0xff]
    %v37 = vld [vmem:[%s0 + $0x58] sm:$0xff]
    %v38 = vld [vmem:[%s0 + $0x60] sm:$0xff]
    %v39 = vld [vmem:[%s0 + $0x68] sm:$0xff]
    %v40 = vld [vmem:[%s0 + $0x70] sm:$0xff]
    %v41 = vld [vmem:[%s0 + $0x78] sm:$0xff]
    %v42 = vld [vmem:[%s0 + $0x80] sm:$0xff]
    %v43 = vld [vmem:[%s0 + $0x88] sm:$0xff]
    %v44 = vld [vmem:[%s0 + $0x90] sm:$0xff]
    %v45 = vld [vmem:[%s0 + $0x98] sm:$0xff]
    %v46 = vld [vmem:[%s0 + $0xa0] sm:$0xff]
    %v47 = vld [vmem:[%s0 + $0xa8] sm:$0xff]
    %v48 = vld [vmem:[%s0 + $0xb0] sm:$0xff]
    %v49 = vld [vmem:[%s0 + $0xb8] sm:$0xff]
    %v50 = vld [vmem:[%s0 + $0xc0] sm:$0xff]
    %v51 = vld [vmem:[%s0 + $0xc8] sm:$0xff]
    %v52 = vld [vmem:[%s0 + $0xd0] sm:$0xff]
    %v53 = vld [vmem:[%s0 + $0xd8] sm:$0xff]
    %v54 = vld [vmem:[%s0 + $0xe0] sm:$0xff]
    %v55 = vld [vmem:[%s0 + $0xe8] sm:$0xff]
    %v56 = vld [vmem:[%s0 + $0xf0] sm:$0xff]
    %v57 = vld [vmem:[%s0 + $0xf8] sm:$0xff]
    %v58 = vld [vmem:[%s1] sm:$0xff]
    %v59 = vld [vmem:[%s1 + $0x8] sm:$0xff]
    %v60 = vld [vmem:[%s1 + $0x10] sm:$0xff]
    %v61 = vld [vmem:[%s1 + $0x18] sm:$0xff]
    %v62 = vld [vmem:[%s1 + $0x20] sm:$0xff]
    %v63 = vld [vmem:[%s1 + $0x28] sm:$0xff]
    %v64 = vld [vmem:[%s1 + $0x30] sm:$0xff]
    %v65 = vld [vmem:[%s1 + $0x38] sm:$0xff]
    %v66 = vlaneseq
    %v67 = vshrl.u32 %v66, 7
    %v68 = vsub.s32 0, %v67
    %v69 = vrot.slane %v25, %v68
    %vm70 = vcmask 523264
    %v72 = vsel %vm70, %v26, 0
    %v75 = vsel %vm70, %v27, 0
    %v78 = vsel %vm70, %v28, 0
    %v81 = vsel %vm70, %v29, 0
    %v84 = vsel %vm70, %v30, 0
    %v87 = vsel %vm70, %v31, 0
    %v90 = vsel %vm70, %v32, 0
    %v93 = vsel %vm70, %v33, 0
    %v96 = vsel %vm70, %v34, 0
    %v99 = vsel %vm70, %v35, 0
    %v102 = vsel %vm70, %v36, 0
    %v105 = vsel %vm70, %v37, 0
    %v108 = vsel %vm70, %v38, 0
    %v111 = vsel %vm70, %v39, 0
    %v114 = vsel %vm70, %v40, 0
    %v117 = vsel %vm70, %v41, 0
    %v120 = vsel %vm70, %v42, 0
    %v123 = vsel %vm70, %v43, 0
    %v126 = vsel %vm70, %v44, 0
    %v129 = vsel %vm70, %v45, 0
    %v132 = vsel %vm70, %v46, 0
    %v135 = vsel %vm70, %v47, 0
    %v138 = vsel %vm70, %v48, 0
    %v141 = vsel %vm70, %v49, 0
    %v144 = vsel %vm70, %v50, 0
    %v147 = vsel %vm70, %v51, 0
    %v150 = vsel %vm70, %v52, 0
    %v153 = vsel %vm70, %v53, 0
    %v156 = vsel %vm70, %v54, 0
    %v159 = vsel %vm70, %v55, 0
    %v162 = vsel %vm70, %v56, 0
    %v165 = vsel %vm70, %v57, 0
    %167 = vmatprep.subr.mxu0 0.0
    %168 = vmatpush1.msra.mxu0 0.0
    %169 = vmatprep.subr.mxu0 0.0
    %170 = vmatpush1.msra.mxu0 0.0
    %171 = vmatprep.subr.mxu0 0.0
    %172 = vmatpush1.msra.mxu0 0.0
    %173 = vmatprep.subr.mxu0 0.0
    %174 = vmatpush1.msra.mxu0 0.0
    %175 = vmatprep.subr.mxu0 0.0
    %176 = vmatpush1.msra.mxu0 0.0
    %177 = vmatprep.subr.mxu0 0.0
    %178 = vmatpush1.msra.mxu0 0.0
    %179 = vmatprep.subr.mxu0 0.0
    %180 = vmatpush1.msra.mxu0 0.0
    %181 = vmatprep.subr.mxu0 0.0
    %182 = vmatpush1.msra.mxu0 0.0
    %183 = vmatprep.subr.mxu0 0.0
    %184 = vmatpush1.msra.mxu0 %v65
    %185 = vmatprep.subr.mxu0 0.0
    %186 = vmatpush1.msra.mxu0 %v64
    %187 = vmatprep.subr.mxu0 0.0
    %188 = vmatpush1.msra.mxu0 %v63
    %189 = vmatprep.subr.mxu0 0.0
    %190 = vmatpush1.msra.mxu0 %v62
    %191 = vmatprep.subr.mxu0 0.0
    %192 = vmatpush1.msra.mxu0 %v61
    %193 = vmatprep.subr.mxu0 0.0
    %194 = vmatpush1.msra.mxu0 %v60
    %195 = vmatprep.subr.mxu0 0.0
    %196 = vmatpush1.msra.mxu0 %v59
    %197 = vmatprep.subr.mxu0 0.0
    %198 = vmatpush1.msra.mxu0 %v58
    %199 = vmatprep.subr.mxu0 0.0
    %200 = vmatpush2.msra.mxu0 0.0
    %201 = vmatprep.subr.mxu0 0.0
    %202 = vmatpush2.msra.mxu0 0.0
    %203 = vmatprep.subr.mxu0 0.0
    %204 = vmatpush2.msra.mxu0 0.0
    %205 = vmatprep.subr.mxu0 0.0
    %206 = vmatpush2.msra.mxu0 0.0
    %207 = vmatprep.subr.mxu0 0.0
    %208 = vmatpush2.msra.mxu0 0.0
    %209 = vmatprep.subr.mxu0 0.0
    %210 = vmatpush2.msra.mxu0 0.0
    %211 = vmatprep.subr.mxu0 0.0
    %212 = vmatpush2.msra.mxu0 0.0
    %213 = vmatprep.subr.mxu0 0.0
    %214 = vmatpush2.msra.mxu0 0.0
    %215 = vmatprep.subr.mxu0 0.0
    %216 = vmatpush2.msra.mxu0 0.0
    %217 = vmatprep.subr.mxu0 0.0
    %218 = vmatpush2.msra.mxu0 0.0
    %219 = vmatprep.subr.mxu0 0.0
    %220 = vmatpush2.msra.mxu0 0.0
    %221 = vmatprep.subr.mxu0 0.0
    %222 = vmatpush2.msra.mxu0 0.0
    %223 = vmatprep.subr.mxu0 0.0
    %224 = vmatpush2.msra.mxu0 0.0
    %225 = vmatprep.subr.mxu0 0.0
    %226 = vmatpush2.msra.mxu0 0.0
    %227 = vmatprep.subr.mxu0 0.0
    %228 = vmatpush2.msra.mxu0 0.0
    %229 = vmatprep.subr.mxu0 0.0
    %230 = vmatpush2.msra.mxu0 0.0
    %231 = vmatprep.mubr.f32.mxu0 0.0
    %232 = vmatmul.mubr.f32.gmra.mxu0 %v72
    %v233 = vpop.f32.mrf.mxu0
    %v234 = vadd.f32 %v69, %v233
    %v235 = vpop.f32.mrf.mxu0
    %236 = vmatprep.mubr.f32.mxu0 0.0
    %237 = vmatmul.mubr.f32.gmra.mxu0 %v75
    %v238 = vpop.f32.mrf.mxu0
    %v239 = vadd.f32 %v69, %v238
    %v240 = vpop.f32.mrf.mxu0
    %241 = vmatprep.mubr.f32.mxu0 0.0
    %242 = vmatmul.mubr.f32.gmra.mxu0 %v78
    %v243 = vpop.f32.mrf.mxu0
    %v244 = vadd.f32 %v69, %v243
    %v245 = vpop.f32.mrf.mxu0
    %246 = vmatprep.mubr.f32.mxu0 0.0
    %247 = vmatmul.mubr.f32.gmra.mxu0 %v81
    %v248 = vpop.f32.mrf.mxu0
    %v249 = vadd.f32 %v69, %v248
    %v250 = vpop.f32.mrf.mxu0
    %251 = vmatprep.mubr.f32.mxu0 0.0
    %252 = vmatmul.mubr.f32.gmra.mxu0 %v84
    %v253 = vpop.f32.mrf.mxu0
    %v254 = vadd.f32 %v69, %v253
    %v255 = vpop.f32.mrf.mxu0
    %256 = vmatprep.mubr.f32.mxu0 0.0
    %257 = vmatmul.mubr.f32.gmra.mxu0 %v87
    %v258 = vpop.f32.mrf.mxu0
    %v259 = vadd.f32 %v69, %v258
    %v260 = vpop.f32.mrf.mxu0
    %261 = vmatprep.mubr.f32.mxu0 0.0
    %262 = vmatmul.mubr.f32.gmra.mxu0 %v90
    %v263 = vpop.f32.mrf.mxu0
    %v264 = vadd.f32 %v69, %v263
    %v265 = vpop.f32.mrf.mxu0
    %266 = vmatprep.mubr.f32.mxu0 0.0
    %267 = vmatmul.mubr.f32.gmra.mxu0 %v93
    %v268 = vpop.f32.mrf.mxu0
    %v269 = vadd.f32 %v69, %v268
    %v270 = vpop.f32.mrf.mxu0
    %271 = vmatprep.mubr.f32.mxu0 0.0
    %272 = vmatmul.mubr.f32.gmra.mxu0 %v96
    %v273 = vpop.f32.mrf.mxu0
    %v274 = vadd.f32 %v69, %v273
    %v275 = vpop.f32.mrf.mxu0
    %276 = vmatprep.mubr.f32.mxu0 0.0
    %277 = vmatmul.mubr.f32.gmra.mxu0 %v99
    %v278 = vpop.f32.mrf.mxu0
    %v279 = vadd.f32 %v69, %v278
    %v280 = vpop.f32.mrf.mxu0
    %281 = vmatprep.mubr.f32.mxu0 0.0
    %282 = vmatmul.mubr.f32.gmra.mxu0 %v102
    %v283 = vpop.f32.mrf.mxu0
    %v284 = vadd.f32 %v69, %v283
    %v285 = vpop.f32.mrf.mxu0
    %286 = vmatprep.mubr.f32.mxu0 0.0
    %287 = vmatmul.mubr.f32.gmra.mxu0 %v105
    %v288 = vpop.f32.mrf.mxu0
    %v289 = vadd.f32 %v69, %v288
    %v290 = vpop.f32.mrf.mxu0
    %291 = vmatprep.mubr.f32.mxu0 0.0
    %292 = vmatmul.mubr.f32.gmra.mxu0 %v108
    %v293 = vpop.f32.mrf.mxu0
    %v294 = vadd.f32 %v69, %v293
    %v295 = vpop.f32.mrf.mxu0
    %296 = vmatprep.mubr.f32.mxu0 0.0
    %297 = vmatmul.mubr.f32.gmra.mxu0 %v111
    %v298 = vpop.f32.mrf.mxu0
    %v299 = vadd.f32 %v69, %v298
    %v300 = vpop.f32.mrf.mxu0
    %301 = vmatprep.mubr.f32.mxu0 0.0
    %302 = vmatmul.mubr.f32.gmra.mxu0 %v114
    %v303 = vpop.f32.mrf.mxu0
    %v304 = vadd.f32 %v69, %v303
    %v305 = vpop.f32.mrf.mxu0
    %306 = vmatprep.mubr.f32.mxu0 0.0
    %307 = vmatmul.mubr.f32.gmra.mxu0 %v117
    %v308 = vpop.f32.mrf.mxu0
    %v309 = vadd.f32 %v69, %v308
    %v310 = vpop.f32.mrf.mxu0
    %311 = vmatprep.mubr.f32.mxu0 0.0
    %312 = vmatmul.mubr.f32.gmra.mxu0 %v120
    %v313 = vpop.f32.mrf.mxu0
    %v314 = vadd.f32 %v69, %v313
    %v315 = vpop.f32.mrf.mxu0
    %316 = vmatprep.mubr.f32.mxu0 0.0
    %317 = vmatmul.mubr.f32.gmra.mxu0 %v123
    %v318 = vpop.f32.mrf.mxu0
    %v319 = vadd.f32 %v69, %v318
    %v320 = vpop.f32.mrf.mxu0
    %321 = vmatprep.mubr.f32.mxu0 0.0
    %322 = vmatmul.mubr.f32.gmra.mxu0 %v126
    %v323 = vpop.f32.mrf.mxu0
    %v324 = vadd.f32 %v69, %v323
    %v325 = vpop.f32.mrf.mxu0
    %326 = vmatprep.mubr.f32.mxu0 0.0
    %327 = vmatmul.mubr.f32.gmra.mxu0 %v129
    %v328 = vpop.f32.mrf.mxu0
    %v329 = vadd.f32 %v69, %v328
    %v330 = vpop.f32.mrf.mxu0
    %331 = vmatprep.mubr.f32.mxu0 0.0
    %332 = vmatmul.mubr.f32.gmra.mxu0 %v132
    %v333 = vpop.f32.mrf.mxu0
    %v334 = vadd.f32 %v69, %v333
    %v335 = vpop.f32.mrf.mxu0
    %336 = vmatprep.mubr.f32.mxu0 0.0
    %337 = vmatmul.mubr.f32.gmra.mxu0 %v135
    %v338 = vpop.f32.mrf.mxu0
    %v339 = vadd.f32 %v69, %v338
    %v340 = vpop.f32.mrf.mxu0
    %341 = vmatprep.mubr.f32.mxu0 0.0
    %342 = vmatmul.mubr.f32.gmra.mxu0 %v138
    %v343 = vpop.f32.mrf.mxu0
    %v344 = vadd.f32 %v69, %v343
    %v345 = vpop.f32.mrf.mxu0
    %346 = vmatprep.mubr.f32.mxu0 0.0
    %347 = vmatmul.mubr.f32.gmra.mxu0 %v141
    %v348 = vpop.f32.mrf.mxu0
    %v349 = vadd.f32 %v69, %v348
    %v350 = vpop.f32.mrf.mxu0
    %351 = vmatprep.mubr.f32.mxu0 0.0
    %352 = vmatmul.mubr.f32.gmra.mxu0 %v144
    %v353 = vpop.f32.mrf.mxu0
    %v354 = vadd.f32 %v69, %v353
    %v355 = vpop.f32.mrf.mxu0
    %356 = vmatprep.mubr.f32.mxu0 0.0
    %357 = vmatmul.mubr.f32.gmra.mxu0 %v147
    %v358 = vpop.f32.mrf.mxu0
    %v359 = vadd.f32 %v69, %v358
    %v360 = vpop.f32.mrf.mxu0
    %361 = vmatprep.mubr.f32.mxu0 0.0
    %362 = vmatmul.mubr.f32.gmra.mxu0 %v150
    %v363 = vpop.f32.mrf.mxu0
    %v364 = vadd.f32 %v69, %v363
    %v365 = vpop.f32.mrf.mxu0
    %366 = vmatprep.mubr.f32.mxu0 0.0
    %367 = vmatmul.mubr.f32.gmra.mxu0 %v153
    %v368 = vpop.f32.mrf.mxu0
    %v369 = vadd.f32 %v69, %v368
    %v370 = vpop.f32.mrf.mxu0
    %371 = vmatprep.mubr.f32.mxu0 0.0
    %372 = vmatmul.mubr.f32.gmra.mxu0 %v156
    %v373 = vpop.f32.mrf.mxu0
    %v374 = vadd.f32 %v69, %v373
    %v375 = vpop.f32.mrf.mxu0
    %376 = vmatprep.mubr.f32.mxu0 0.0
    %377 = vmatmul.mubr.f32.gmra.mxu0 %v159
    %v378 = vpop.f32.mrf.mxu0
    %v379 = vadd.f32 %v69, %v378
    %v380 = vpop.f32.mrf.mxu0
    %381 = vmatprep.mubr.f32.mxu0 0.0
    %382 = vmatmul.mubr.f32.gmra.mxu0 %v162
    %v383 = vpop.f32.mrf.mxu0
    %v384 = vadd.f32 %v69, %v383
    %v385 = vpop.f32.mrf.mxu0
    %386 = vmatprep.mubr.f32.mxu0 0.0
    %387 = vmatmul.mubr.f32.gmra.mxu0 %v165
    %v388 = vpop.f32.mrf.mxu0
    %v389 = vadd.f32 %v69, %v388
    %v390 = vpop.f32.mrf.mxu0
    %391 = vdwg.mxu0
    %v392 = vmul.f32 %v234, %v234
    %v393 = vmul.f32 %v239, %v239
    %v394 = vmul.f32 %v244, %v244
    %v395 = vmul.f32 %v249, %v249
    %v396 = vmul.f32 %v254, %v254
    %v397 = vmul.f32 %v259, %v259
    %v398 = vmul.f32 %v264, %v264
    %v399 = vmul.f32 %v269, %v269
    %v400 = vmul.f32 %v274, %v274
    %v401 = vmul.f32 %v279, %v279
    %v402 = vmul.f32 %v284, %v284
    %v403 = vmul.f32 %v289, %v289
    %v404 = vmul.f32 %v294, %v294
    %v405 = vmul.f32 %v299, %v299
    %v406 = vmul.f32 %v304, %v304
    %v407 = vmul.f32 %v309, %v309
    %v408 = vmul.f32 %v314, %v314
    %v409 = vmul.f32 %v319, %v319
    %v410 = vmul.f32 %v324, %v324
    %v411 = vmul.f32 %v329, %v329
    %v412 = vmul.f32 %v334, %v334
    %v413 = vmul.f32 %v339, %v339
    %v414 = vmul.f32 %v344, %v344
    %v415 = vmul.f32 %v349, %v349
    %v416 = vmul.f32 %v354, %v354
    %v417 = vmul.f32 %v359, %v359
    %v418 = vmul.f32 %v364, %v364
    %v419 = vmul.f32 %v369, %v369
    %v420 = vmul.f32 %v374, %v374
    %v421 = vmul.f32 %v379, %v379
    %v422 = vmul.f32 %v384, %v384
    %v423 = vmul.f32 %v389, %v389
    %vm424 = vcmask 261120
    %v425 = vsel %vm424, %v392, 0.0
    %426 = vadd.xlane.f32.xlu0 %v425
    %v427 = vpop.xlane.xlu0 %426
    %v428 = vsel %vm424, %v393, 0.0
    %429 = vadd.xlane.f32.xlu0 %v428
    %v430 = vpop.xlane.xlu0 %429
    %v431 = vsel %vm424, %v394, 0.0
    %432 = vadd.xlane.f32.xlu0 %v431
    %v433 = vpop.xlane.xlu0 %432
    %v434 = vsel %vm424, %v395, 0.0
    %435 = vadd.xlane.f32.xlu0 %v434
    %v436 = vpop.xlane.xlu0 %435
    %v437 = vsel %vm424, %v396, 0.0
    %438 = vadd.xlane.f32.xlu0 %v437
    %v439 = vpop.xlane.xlu0 %438
    %v440 = vsel %vm424, %v397, 0.0
    %441 = vadd.xlane.f32.xlu0 %v440
    %v442 = vpop.xlane.xlu0 %441
    %v443 = vsel %vm424, %v398, 0.0
    %444 = vadd.xlane.f32.xlu0 %v443
    %v445 = vpop.xlane.xlu0 %444
    %v446 = vsel %vm424, %v399, 0.0
    %447 = vadd.xlane.f32.xlu0 %v446
    %v448 = vpop.xlane.xlu0 %447
    %v449 = vsel %vm424, %v400, 0.0
    %450 = vadd.xlane.f32.xlu0 %v449
    %v451 = vpop.xlane.xlu0 %450
    %v452 = vsel %vm424, %v401, 0.0
    %453 = vadd.xlane.f32.xlu0 %v452
    %v454 = vpop.xlane.xlu0 %453
    %v455 = vsel %vm424, %v402, 0.0
    %456 = vadd.xlane.f32.xlu0 %v455
    %v457 = vpop.xlane.xlu0 %456
    %v458 = vsel %vm424, %v403, 0.0
    %459 = vadd.xlane.f32.xlu0 %v458
    %v460 = vpop.xlane.xlu0 %459
    %v461 = vsel %vm424, %v404, 0.0
    %462 = vadd.xlane.f32.xlu0 %v461
    %v463 = vpop.xlane.xlu0 %462
    %v464 = vsel %vm424, %v405, 0.0
    %465 = vadd.xlane.f32.xlu0 %v464
    %v466 = vpop.xlane.xlu0 %465
    %v467 = vsel %vm424, %v406, 0.0
    %468 = vadd.xlane.f32.xlu0 %v467
    %v469 = vpop.xlane.xlu0 %468
    %v470 = vsel %vm424, %v407, 0.0
    %471 = vadd.xlane.f32.xlu0 %v470
    %v472 = vpop.xlane.xlu0 %471
    %v473 = vsel %vm424, %v408, 0.0
    %474 = vadd.xlane.f32.xlu0 %v473
    %v475 = vpop.xlane.xlu0 %474
    %v476 = vsel %vm424, %v409, 0.0
    %477 = vadd.xlane.f32.xlu0 %v476
    %v478 = vpop.xlane.xlu0 %477
    %v479 = vsel %vm424, %v410, 0.0
    %480 = vadd.xlane.f32.xlu0 %v479
    %v481 = vpop.xlane.xlu0 %480
    %v482 = vsel %vm424, %v411, 0.0
    %483 = vadd.xlane.f32.xlu0 %v482
    %v484 = vpop.xlane.xlu0 %483
    %v485 = vsel %vm424, %v412, 0.0
    %486 = vadd.xlane.f32.xlu0 %v485
    %v487 = vpop.xlane.xlu0 %486
    %v488 = vsel %vm424, %v413, 0.0
    %489 = vadd.xlane.f32.xlu0 %v488
    %v490 = vpop.xlane.xlu0 %489
    %v491 = vsel %vm424, %v414, 0.0
    %492 = vadd.xlane.f32.xlu0 %v491
    %v493 = vpop.xlane.xlu0 %492
    %v494 = vsel %vm424, %v415, 0.0
    %495 = vadd.xlane.f32.xlu0 %v494
    %v496 = vpop.xlane.xlu0 %495
    %v497 = vsel %vm424, %v416, 0.0
    %498 = vadd.xlane.f32.xlu0 %v497
    %v499 = vpop.xlane.xlu0 %498
    %v500 = vsel %vm424, %v417, 0.0
    %501 = vadd.xlane.f32.xlu0 %v500
    %v502 = vpop.xlane.xlu0 %501
    %v503 = vsel %vm424, %v418, 0.0
    %504 = vadd.xlane.f32.xlu0 %v503
    %v505 = vpop.xlane.xlu0 %504
    %v506 = vsel %vm424, %v419, 0.0
    %507 = vadd.xlane.f32.xlu0 %v506
    %v508 = vpop.xlane.xlu0 %507
    %v509 = vsel %vm424, %v420, 0.0
    %510 = vadd.xlane.f32.xlu0 %v509
    %v511 = vpop.xlane.xlu0 %510
    %v512 = vsel %vm424, %v421, 0.0
    %513 = vadd.xlane.f32.xlu0 %v512
    %v514 = vpop.xlane.xlu0 %513
    %v515 = vsel %vm424, %v422, 0.0
    %516 = vadd.xlane.f32.xlu0 %v515
    %v517 = vpop.xlane.xlu0 %516
    %v518 = vsel %vm424, %v423, 0.0
    %519 = vadd.xlane.f32.xlu0 %v518
    %v520 = vpop.xlane.xlu0 %519
    %v521 = vmax.f32 %v427, 1e-16
    %v522 = vmax.f32 %v430, 1e-16
    %v523 = vmax.f32 %v433, 1e-16
    %v524 = vmax.f32 %v436, 1e-16
    %v525 = vmax.f32 %v439, 1e-16
    %v526 = vmax.f32 %v442, 1e-16
    %v527 = vmax.f32 %v445, 1e-16
    %v528 = vmax.f32 %v448, 1e-16
    %v529 = vmax.f32 %v451, 1e-16
    %v530 = vmax.f32 %v454, 1e-16
    %v531 = vmax.f32 %v457, 1e-16
    %v532 = vmax.f32 %v460, 1e-16
    %v533 = vmax.f32 %v463, 1e-16
    %v534 = vmax.f32 %v466, 1e-16
    %v535 = vmax.f32 %v469, 1e-16
    %v536 = vmax.f32 %v472, 1e-16
    %v537 = vmax.f32 %v475, 1e-16
    %v538 = vmax.f32 %v478, 1e-16
    %v539 = vmax.f32 %v481, 1e-16
    %v540 = vmax.f32 %v484, 1e-16
    %v541 = vmax.f32 %v487, 1e-16
    %v542 = vmax.f32 %v490, 1e-16
    %v543 = vmax.f32 %v493, 1e-16
    %v544 = vmax.f32 %v496, 1e-16
    %v545 = vmax.f32 %v499, 1e-16
    %v546 = vmax.f32 %v502, 1e-16
    %v547 = vmax.f32 %v505, 1e-16
    %v548 = vmax.f32 %v508, 1e-16
    %v549 = vmax.f32 %v511, 1e-16
    %v550 = vmax.f32 %v514, 1e-16
    %v551 = vmax.f32 %v517, 1e-16
    %v552 = vmax.f32 %v520, 1e-16
    %v553 = vrsqrt.pop %v521
    %v554 = vrsqrt.pop %v522
    %v555 = vrsqrt.pop %v523
    %v556 = vrsqrt.pop %v524
    %v557 = vrsqrt.pop %v525
    %v558 = vrsqrt.pop %v526
    %v559 = vrsqrt.pop %v527
    %v560 = vrsqrt.pop %v528
    %v561 = vrsqrt.pop %v529
    %v562 = vrsqrt.pop %v530
    %v563 = vrsqrt.pop %v531
    %v564 = vrsqrt.pop %v532
    %v565 = vrsqrt.pop %v533
    %v566 = vrsqrt.pop %v534
    %v567 = vrsqrt.pop %v535
    %v568 = vrsqrt.pop %v536
    %v569 = vrsqrt.pop %v537
    %v570 = vrsqrt.pop %v538
    %v571 = vrsqrt.pop %v539
    %v572 = vrsqrt.pop %v540
    %v573 = vrsqrt.pop %v541
    %v574 = vrsqrt.pop %v542
    %v575 = vrsqrt.pop %v543
    %v576 = vrsqrt.pop %v544
    %v577 = vrsqrt.pop %v545
    %v578 = vrsqrt.pop %v546
    %v579 = vrsqrt.pop %v547
    %v580 = vrsqrt.pop %v548
    %v581 = vrsqrt.pop %v549
    %v582 = vrsqrt.pop %v550
    %v583 = vrsqrt.pop %v551
    %v584 = vrsqrt.pop %v552
    %v585 = vmul.f32 %v234, %v553
    %v586 = vmul.f32 %v239, %v554
    %v587 = vmul.f32 %v244, %v555
    %v588 = vmul.f32 %v249, %v556
    %v589 = vmul.f32 %v254, %v557
    %v590 = vmul.f32 %v259, %v558
    %v591 = vmul.f32 %v264, %v559
    %v592 = vmul.f32 %v269, %v560
    %v593 = vmul.f32 %v274, %v561
    %v594 = vmul.f32 %v279, %v562
    %v595 = vmul.f32 %v284, %v563
    %v596 = vmul.f32 %v289, %v564
    %v597 = vmul.f32 %v294, %v565
    %v598 = vmul.f32 %v299, %v566
    %v599 = vmul.f32 %v304, %v567
    %v600 = vmul.f32 %v309, %v568
    %v601 = vmul.f32 %v314, %v569
    %v602 = vmul.f32 %v319, %v570
    %v603 = vmul.f32 %v324, %v571
    %v604 = vmul.f32 %v329, %v572
    %v605 = vmul.f32 %v334, %v573
    %v606 = vmul.f32 %v339, %v574
    %v607 = vmul.f32 %v344, %v575
    %v608 = vmul.f32 %v349, %v576
    %v609 = vmul.f32 %v354, %v577
    %v610 = vmul.f32 %v359, %v578
    %v611 = vmul.f32 %v364, %v579
    %v612 = vmul.f32 %v369, %v580
    %v613 = vmul.f32 %v374, %v581
    %v614 = vmul.f32 %v379, %v582
    %v615 = vmul.f32 %v384, %v583
    %v616 = vmul.f32 %v389, %v584
    %617 = vst.msk [vmem:[#allocation3] sm:$0xff] %vm424, %v585
    %618 = vst.msk [vmem:[#allocation3 + $0x8] sm:$0xff] %vm424, %v586
    %619 = vst.msk [vmem:[#allocation3 + $0x10] sm:$0xff] %vm424, %v587
    %620 = vst.msk [vmem:[#allocation3 + $0x18] sm:$0xff] %vm424, %v588
    %621 = vst.msk [vmem:[#allocation3 + $0x20] sm:$0xff] %vm424, %v589
    %622 = vst.msk [vmem:[#allocation3 + $0x28] sm:$0xff] %vm424, %v590
    %623 = vst.msk [vmem:[#allocation3 + $0x30] sm:$0xff] %vm424, %v591
    %624 = vst.msk [vmem:[#allocation3 + $0x38] sm:$0xff] %vm424, %v592
    %625 = vst.msk [vmem:[#allocation3 + $0x40] sm:$0xff] %vm424, %v593
    %626 = vst.msk [vmem:[#allocation3 + $0x48] sm:$0xff] %vm424, %v594
    %627 = vst.msk [vmem:[#allocation3 + $0x50] sm:$0xff] %vm424, %v595
    %628 = vst.msk [vmem:[#allocation3 + $0x58] sm:$0xff] %vm424, %v596
    %629 = vst.msk [vmem:[#allocation3 + $0x60] sm:$0xff] %vm424, %v597
    %630 = vst.msk [vmem:[#allocation3 + $0x68] sm:$0xff] %vm424, %v598
    %631 = vst.msk [vmem:[#allocation3 + $0x70] sm:$0xff] %vm424, %v599
    %632 = vst.msk [vmem:[#allocation3 + $0x78] sm:$0xff] %vm424, %v600
    %633 = vst.msk [vmem:[#allocation3 + $0x80] sm:$0xff] %vm424, %v601
    %634 = vst.msk [vmem:[#allocation3 + $0x88] sm:$0xff] %vm424, %v602
    %635 = vst.msk [vmem:[#allocation3 + $0x90] sm:$0xff] %vm424, %v603
    %636 = vst.msk [vmem:[#allocation3 + $0x98] sm:$0xff] %vm424, %v604
    %637 = vst.msk [vmem:[#allocation3 + $0xa0] sm:$0xff] %vm424, %v605
    %638 = vst.msk [vmem:[#allocation3 + $0xa8] sm:$0xff] %vm424, %v606
    %639 = vst.msk [vmem:[#allocation3 + $0xb0] sm:$0xff] %vm424, %v607
    %640 = vst.msk [vmem:[#allocation3 + $0xb8] sm:$0xff] %vm424, %v608
    %641 = vst.msk [vmem:[#allocation3 + $0xc0] sm:$0xff] %vm424, %v609
    %642 = vst.msk [vmem:[#allocation3 + $0xc8] sm:$0xff] %vm424, %v610
    %643 = vst.msk [vmem:[#allocation3 + $0xd0] sm:$0xff] %vm424, %v611
    %644 = vst.msk [vmem:[#allocation3 + $0xd8] sm:$0xff] %vm424, %v612
    %645 = vst.msk [vmem:[#allocation3 + $0xe0] sm:$0xff] %vm424, %v613
    %646 = vst.msk [vmem:[#allocation3 + $0xe8] sm:$0xff] %vm424, %v614
    %647 = vst.msk [vmem:[#allocation3 + $0xf0] sm:$0xff] %vm424, %v615
    %648 = vst.msk [vmem:[#allocation3 + $0xf8] sm:$0xff] %vm424, %v616
    %v649 = vld [vmem:[%s2] sm:$0xff]
    %v650 = vld [vmem:[%s2 + $0x8] sm:$0xff]
    %v651 = vld [vmem:[%s2 + $0x10] sm:$0xff]
    %v652 = vld [vmem:[%s2 + $0x18] sm:$0xff]
    %v653 = vlaneseq
    %v654 = vshrl.u32 %v653, 7
    %v655 = vsub.s32 1, %v654
    %v656 = vrot.slane %v25, %v655
    %v658 = vsel %vm424, %v585, 0
    %v661 = vsel %vm424, %v586, 0
    %v664 = vsel %vm424, %v587, 0
    %v667 = vsel %vm424, %v588, 0
    %v670 = vsel %vm424, %v589, 0
    %v673 = vsel %vm424, %v590, 0
    %v676 = vsel %vm424, %v591, 0
    %v679 = vsel %vm424, %v592, 0
    %v682 = vsel %vm424, %v593, 0
    %v685 = vsel %vm424, %v594, 0
    %v688 = vsel %vm424, %v595, 0
    %v691 = vsel %vm424, %v596, 0
    %v694 = vsel %vm424, %v597, 0
    %v697 = vsel %vm424, %v598, 0
    %v700 = vsel %vm424, %v599, 0
    %v703 = vsel %vm424, %v600, 0
    %v706 = vsel %vm424, %v601, 0
    %v709 = vsel %vm424, %v602, 0
    %v712 = vsel %vm424, %v603, 0
    %v715 = vsel %vm424, %v604, 0
    %v718 = vsel %vm424, %v605, 0
    %v721 = vsel %vm424, %v606, 0
    %v724 = vsel %vm424, %v607, 0
    %v727 = vsel %vm424, %v608, 0
    %v730 = vsel %vm424, %v609, 0
    %v733 = vsel %vm424, %v610, 0
    %v736 = vsel %vm424, %v611, 0
    %v739 = vsel %vm424, %v612, 0
    %v742 = vsel %vm424, %v613, 0
    %v745 = vsel %vm424, %v614, 0
    %v748 = vsel %vm424, %v615, 0
    %v751 = vsel %vm424, %v616, 0
    %753 = vmatprep.subr.mxu0 0.0
    %754 = vmatpush1.msra.mxu0 0.0
    %755 = vmatprep.subr.mxu0 0.0
    %756 = vmatpush1.msra.mxu0 0.0
    %757 = vmatprep.subr.mxu0 0.0
    %758 = vmatpush1.msra.mxu0 0.0
    %759 = vmatprep.subr.mxu0 0.0
    %760 = vmatpush1.msra.mxu0 0.0
    %761 = vmatprep.subr.mxu0 0.0
    %762 = vmatpush1.msra.mxu0 0.0
    %763 = vmatprep.subr.mxu0 0.0
    %764 = vmatpush1.msra.mxu0 0.0
    %765 = vmatprep.subr.mxu0 0.0
    %766 = vmatpush1.msra.mxu0 0.0
    %767 = vmatprep.subr.mxu0 0.0
    %768 = vmatpush1.msra.mxu0 0.0
    %769 = vmatprep.subr.mxu0 0.0
    %770 = vmatpush1.msra.mxu0 0.0
    %771 = vmatprep.subr.mxu0 0.0
    %772 = vmatpush1.msra.mxu0 0.0
    %773 = vmatprep.subr.mxu0 0.0
    %774 = vmatpush1.msra.mxu0 0.0
    %775 = vmatprep.subr.mxu0 0.0
    %776 = vmatpush1.msra.mxu0 0.0
    %777 = vmatprep.subr.mxu0 0.0
    %778 = vmatpush1.msra.mxu0 %v652
    %779 = vmatprep.subr.mxu0 0.0
    %780 = vmatpush1.msra.mxu0 %v651
    %781 = vmatprep.subr.mxu0 0.0
    %782 = vmatpush1.msra.mxu0 %v650
    %783 = vmatprep.subr.mxu0 0.0
    %784 = vmatpush1.msra.mxu0 %v649
    %785 = vmatprep.subr.mxu0 0.0
    %786 = vmatpush2.msra.mxu0 0.0
    %787 = vmatprep.subr.mxu0 0.0
    %788 = vmatpush2.msra.mxu0 0.0
    %789 = vmatprep.subr.mxu0 0.0
    %790 = vmatpush2.msra.mxu0 0.0
    %791 = vmatprep.subr.mxu0 0.0
    %792 = vmatpush2.msra.mxu0 0.0
    %793 = vmatprep.subr.mxu0 0.0
    %794 = vmatpush2.msra.mxu0 0.0
    %795 = vmatprep.subr.mxu0 0.0
    %796 = vmatpush2.msra.mxu0 0.0
    %797 = vmatprep.subr.mxu0 0.0
    %798 = vmatpush2.msra.mxu0 0.0
    %799 = vmatprep.subr.mxu0 0.0
    %800 = vmatpush2.msra.mxu0 0.0
    %801 = vmatprep.subr.mxu0 0.0
    %802 = vmatpush2.msra.mxu0 0.0
    %803 = vmatprep.subr.mxu0 0.0
    %804 = vmatpush2.msra.mxu0 0.0
    %805 = vmatprep.subr.mxu0 0.0
    %806 = vmatpush2.msra.mxu0 0.0
    %807 = vmatprep.subr.mxu0 0.0
    %808 = vmatpush2.msra.mxu0 0.0
    %809 = vmatprep.subr.mxu0 0.0
    %810 = vmatpush2.msra.mxu0 0.0
    %811 = vmatprep.subr.mxu0 0.0
    %812 = vmatpush2.msra.mxu0 0.0
    %813 = vmatprep.subr.mxu0 0.0
    %814 = vmatpush2.msra.mxu0 0.0
    %815 = vmatprep.subr.mxu0 0.0
    %816 = vmatpush2.msra.mxu0 0.0
    %817 = vmatprep.mubr.f32.mxu0 0.0
    %818 = vmatmul.mubr.f32.gmra.mxu0 %v658
    %v819 = vpop.f32.mrf.mxu0
    %v820 = vadd.f32 %v656, %v819
    %v821 = vpop.f32.mrf.mxu0
    %822 = vmatprep.mubr.f32.mxu0 0.0
    %823 = vmatmul.mubr.f32.gmra.mxu0 %v661
    %v824 = vpop.f32.mrf.mxu0
    %v825 = vadd.f32 %v656, %v824
    %v826 = vpop.f32.mrf.mxu0
    %827 = vmatprep.mubr.f32.mxu0 0.0
    %828 = vmatmul.mubr.f32.gmra.mxu0 %v664
    %v829 = vpop.f32.mrf.mxu0
    %v830 = vadd.f32 %v656, %v829
    %v831 = vpop.f32.mrf.mxu0
    %832 = vmatprep.mubr.f32.mxu0 0.0
    %833 = vmatmul.mubr.f32.gmra.mxu0 %v667
    %v834 = vpop.f32.mrf.mxu0
    %v835 = vadd.f32 %v656, %v834
    %v836 = vpop.f32.mrf.mxu0
    %837 = vmatprep.mubr.f32.mxu0 0.0
    %838 = vmatmul.mubr.f32.gmra.mxu0 %v670
    %v839 = vpop.f32.mrf.mxu0
    %v840 = vadd.f32 %v656, %v839
    %v841 = vpop.f32.mrf.mxu0
    %842 = vmatprep.mubr.f32.mxu0 0.0
    %843 = vmatmul.mubr.f32.gmra.mxu0 %v673
    %v844 = vpop.f32.mrf.mxu0
    %v845 = vadd.f32 %v656, %v844
    %v846 = vpop.f32.mrf.mxu0
    %847 = vmatprep.mubr.f32.mxu0 0.0
    %848 = vmatmul.mubr.f32.gmra.mxu0 %v676
    %v849 = vpop.f32.mrf.mxu0
    %v850 = vadd.f32 %v656, %v849
    %v851 = vpop.f32.mrf.mxu0
    %852 = vmatprep.mubr.f32.mxu0 0.0
    %853 = vmatmul.mubr.f32.gmra.mxu0 %v679
    %v854 = vpop.f32.mrf.mxu0
    %v855 = vadd.f32 %v656, %v854
    %v856 = vpop.f32.mrf.mxu0
    %857 = vmatprep.mubr.f32.mxu0 0.0
    %858 = vmatmul.mubr.f32.gmra.mxu0 %v682
    %v859 = vpop.f32.mrf.mxu0
    %v860 = vadd.f32 %v656, %v859
    %v861 = vpop.f32.mrf.mxu0
    %862 = vmatprep.mubr.f32.mxu0 0.0
    %863 = vmatmul.mubr.f32.gmra.mxu0 %v685
    %v864 = vpop.f32.mrf.mxu0
    %v865 = vadd.f32 %v656, %v864
    %v866 = vpop.f32.mrf.mxu0
    %867 = vmatprep.mubr.f32.mxu0 0.0
    %868 = vmatmul.mubr.f32.gmra.mxu0 %v688
    %v869 = vpop.f32.mrf.mxu0
    %v870 = vadd.f32 %v656, %v869
    %v871 = vpop.f32.mrf.mxu0
    %872 = vmatprep.mubr.f32.mxu0 0.0
    %873 = vmatmul.mubr.f32.gmra.mxu0 %v691
    %v874 = vpop.f32.mrf.mxu0
    %v875 = vadd.f32 %v656, %v874
    %v876 = vpop.f32.mrf.mxu0
    %877 = vmatprep.mubr.f32.mxu0 0.0
    %878 = vmatmul.mubr.f32.gmra.mxu0 %v694
    %v879 = vpop.f32.mrf.mxu0
    %v880 = vadd.f32 %v656, %v879
    %v881 = vpop.f32.mrf.mxu0
    %882 = vmatprep.mubr.f32.mxu0 0.0
    %883 = vmatmul.mubr.f32.gmra.mxu0 %v697
    %v884 = vpop.f32.mrf.mxu0
    %v885 = vadd.f32 %v656, %v884
    %v886 = vpop.f32.mrf.mxu0
    %887 = vmatprep.mubr.f32.mxu0 0.0
    %888 = vmatmul.mubr.f32.gmra.mxu0 %v700
    %v889 = vpop.f32.mrf.mxu0
    %v890 = vadd.f32 %v656, %v889
    %v891 = vpop.f32.mrf.mxu0
    %892 = vmatprep.mubr.f32.mxu0 0.0
    %893 = vmatmul.mubr.f32.gmra.mxu0 %v703
    %v894 = vpop.f32.mrf.mxu0
    %v895 = vadd.f32 %v656, %v894
    %v896 = vpop.f32.mrf.mxu0
    %897 = vmatprep.mubr.f32.mxu0 0.0
    %898 = vmatmul.mubr.f32.gmra.mxu0 %v706
    %v899 = vpop.f32.mrf.mxu0
    %v900 = vadd.f32 %v656, %v899
    %v901 = vpop.f32.mrf.mxu0
    %902 = vmatprep.mubr.f32.mxu0 0.0
    %903 = vmatmul.mubr.f32.gmra.mxu0 %v709
    %v904 = vpop.f32.mrf.mxu0
    %v905 = vadd.f32 %v656, %v904
    %v906 = vpop.f32.mrf.mxu0
    %907 = vmatprep.mubr.f32.mxu0 0.0
    %908 = vmatmul.mubr.f32.gmra.mxu0 %v712
    %v909 = vpop.f32.mrf.mxu0
    %v910 = vadd.f32 %v656, %v909
    %v911 = vpop.f32.mrf.mxu0
    %912 = vmatprep.mubr.f32.mxu0 0.0
    %913 = vmatmul.mubr.f32.gmra.mxu0 %v715
    %v914 = vpop.f32.mrf.mxu0
    %v915 = vadd.f32 %v656, %v914
    %v916 = vpop.f32.mrf.mxu0
    %917 = vmatprep.mubr.f32.mxu0 0.0
    %918 = vmatmul.mubr.f32.gmra.mxu0 %v718
    %v919 = vpop.f32.mrf.mxu0
    %v920 = vadd.f32 %v656, %v919
    %v921 = vpop.f32.mrf.mxu0
    %922 = vmatprep.mubr.f32.mxu0 0.0
    %923 = vmatmul.mubr.f32.gmra.mxu0 %v721
    %v924 = vpop.f32.mrf.mxu0
    %v925 = vadd.f32 %v656, %v924
    %v926 = vpop.f32.mrf.mxu0
    %927 = vmatprep.mubr.f32.mxu0 0.0
    %928 = vmatmul.mubr.f32.gmra.mxu0 %v724
    %v929 = vpop.f32.mrf.mxu0
    %v930 = vadd.f32 %v656, %v929
    %v931 = vpop.f32.mrf.mxu0
    %932 = vmatprep.mubr.f32.mxu0 0.0
    %933 = vmatmul.mubr.f32.gmra.mxu0 %v727
    %v934 = vpop.f32.mrf.mxu0
    %v935 = vadd.f32 %v656, %v934
    %v936 = vpop.f32.mrf.mxu0
    %937 = vmatprep.mubr.f32.mxu0 0.0
    %938 = vmatmul.mubr.f32.gmra.mxu0 %v730
    %v939 = vpop.f32.mrf.mxu0
    %v940 = vadd.f32 %v656, %v939
    %v941 = vpop.f32.mrf.mxu0
    %942 = vmatprep.mubr.f32.mxu0 0.0
    %943 = vmatmul.mubr.f32.gmra.mxu0 %v733
    %v944 = vpop.f32.mrf.mxu0
    %v945 = vadd.f32 %v656, %v944
    %v946 = vpop.f32.mrf.mxu0
    %947 = vmatprep.mubr.f32.mxu0 0.0
    %948 = vmatmul.mubr.f32.gmra.mxu0 %v736
    %v949 = vpop.f32.mrf.mxu0
    %v950 = vadd.f32 %v656, %v949
    %v951 = vpop.f32.mrf.mxu0
    %952 = vmatprep.mubr.f32.mxu0 0.0
    %953 = vmatmul.mubr.f32.gmra.mxu0 %v739
    %v954 = vpop.f32.mrf.mxu0
    %v955 = vadd.f32 %v656, %v954
    %v956 = vpop.f32.mrf.mxu0
    %957 = vmatprep.mubr.f32.mxu0 0.0
    %958 = vmatmul.mubr.f32.gmra.mxu0 %v742
    %v959 = vpop.f32.mrf.mxu0
    %v960 = vadd.f32 %v656, %v959
    %v961 = vpop.f32.mrf.mxu0
    %962 = vmatprep.mubr.f32.mxu0 0.0
    %963 = vmatmul.mubr.f32.gmra.mxu0 %v745
    %v964 = vpop.f32.mrf.mxu0
    %v965 = vadd.f32 %v656, %v964
    %v966 = vpop.f32.mrf.mxu0
    %967 = vmatprep.mubr.f32.mxu0 0.0
    %968 = vmatmul.mubr.f32.gmra.mxu0 %v748
    %v969 = vpop.f32.mrf.mxu0
    %v970 = vadd.f32 %v656, %v969
    %v971 = vpop.f32.mrf.mxu0
    %972 = vmatprep.mubr.f32.mxu0 0.0
    %973 = vmatmul.mubr.f32.gmra.mxu0 %v751
    %v974 = vpop.f32.mrf.mxu0
    %v975 = vadd.f32 %v656, %v974
    %v976 = vpop.f32.mrf.mxu0
    %977 = vdwg.mxu0
    %v978 = vmul.f32 %v820, 0.01
    %v979 = vmul.f32 %v825, 0.01
    %v980 = vmul.f32 %v830, 0.01
    %v981 = vmul.f32 %v835, 0.01
    %v982 = vmul.f32 %v840, 0.01
    %v983 = vmul.f32 %v845, 0.01
    %v984 = vmul.f32 %v850, 0.01
    %v985 = vmul.f32 %v855, 0.01
    %v986 = vmul.f32 %v860, 0.01
    %v987 = vmul.f32 %v865, 0.01
    %v988 = vmul.f32 %v870, 0.01
    %v989 = vmul.f32 %v875, 0.01
    %v990 = vmul.f32 %v880, 0.01
    %v991 = vmul.f32 %v885, 0.01
    %v992 = vmul.f32 %v890, 0.01
    %v993 = vmul.f32 %v895, 0.01
    %v994 = vmul.f32 %v900, 0.01
    %v995 = vmul.f32 %v905, 0.01
    %v996 = vmul.f32 %v910, 0.01
    %v997 = vmul.f32 %v915, 0.01
    %v998 = vmul.f32 %v920, 0.01
    %v999 = vmul.f32 %v925, 0.01
    %v1000 = vmul.f32 %v930, 0.01
    %v1001 = vmul.f32 %v935, 0.01
    %v1002 = vmul.f32 %v940, 0.01
    %v1003 = vmul.f32 %v945, 0.01
    %v1004 = vmul.f32 %v950, 0.01
    %v1005 = vmul.f32 %v955, 0.01
    %v1006 = vmul.f32 %v960, 0.01
    %v1007 = vmul.f32 %v965, 0.01
    %v1008 = vmul.f32 %v970, 0.01
    %v1009 = vmul.f32 %v975, 0.01
    %v1010 = vmax.f32 %v820, %v978
    %v1011 = vmax.f32 %v825, %v979
    %v1012 = vmax.f32 %v830, %v980
    %v1013 = vmax.f32 %v835, %v981
    %v1014 = vmax.f32 %v840, %v982
    %v1015 = vmax.f32 %v845, %v983
    %v1016 = vmax.f32 %v850, %v984
    %v1017 = vmax.f32 %v855, %v985
    %v1018 = vmax.f32 %v860, %v986
    %v1019 = vmax.f32 %v865, %v987
    %v1020 = vmax.f32 %v870, %v988
    %v1021 = vmax.f32 %v875, %v989
    %v1022 = vmax.f32 %v880, %v990
    %v1023 = vmax.f32 %v885, %v991
    %v1024 = vmax.f32 %v890, %v992
    %v1025 = vmax.f32 %v895, %v993
    %v1026 = vmax.f32 %v900, %v994
    %v1027 = vmax.f32 %v905, %v995
    %v1028 = vmax.f32 %v910, %v996
    %v1029 = vmax.f32 %v915, %v997
    %v1030 = vmax.f32 %v920, %v998
    %v1031 = vmax.f32 %v925, %v999
    %v1032 = vmax.f32 %v930, %v1000
    %v1033 = vmax.f32 %v935, %v1001
    %v1034 = vmax.f32 %v940, %v1002
    %v1035 = vmax.f32 %v945, %v1003
    %v1036 = vmax.f32 %v950, %v1004
    %v1037 = vmax.f32 %v955, %v1005
    %v1038 = vmax.f32 %v960, %v1006
    %v1039 = vmax.f32 %v965, %v1007
    %v1040 = vmax.f32 %v970, %v1008
    %v1041 = vmax.f32 %v975, %v1009
    %v1042 = vlaneseq
    %v1043 = vshrl.u32 %v1042, 7
    %v1044 = vsub.s32 2, %v1043
    %v1045 = vrot.slane %v25, %v1044
    %v1046 = vmul.f32 %v1010, %v1045
    %v1047 = vmul.f32 %v1011, %v1045
    %v1048 = vmul.f32 %v1012, %v1045
    %v1049 = vmul.f32 %v1013, %v1045
    %v1050 = vmul.f32 %v1014, %v1045
    %v1051 = vmul.f32 %v1015, %v1045
    %v1052 = vmul.f32 %v1016, %v1045
    %v1053 = vmul.f32 %v1017, %v1045
    %v1054 = vmul.f32 %v1018, %v1045
    %v1055 = vmul.f32 %v1019, %v1045
    %v1056 = vmul.f32 %v1020, %v1045
    %v1057 = vmul.f32 %v1021, %v1045
    %v1058 = vmul.f32 %v1022, %v1045
    %v1059 = vmul.f32 %v1023, %v1045
    %v1060 = vmul.f32 %v1024, %v1045
    %v1061 = vmul.f32 %v1025, %v1045
    %v1062 = vmul.f32 %v1026, %v1045
    %v1063 = vmul.f32 %v1027, %v1045
    %v1064 = vmul.f32 %v1028, %v1045
    %v1065 = vmul.f32 %v1029, %v1045
    %v1066 = vmul.f32 %v1030, %v1045
    %v1067 = vmul.f32 %v1031, %v1045
    %v1068 = vmul.f32 %v1032, %v1045
    %v1069 = vmul.f32 %v1033, %v1045
    %v1070 = vmul.f32 %v1034, %v1045
    %v1071 = vmul.f32 %v1035, %v1045
    %v1072 = vmul.f32 %v1036, %v1045
    %v1073 = vmul.f32 %v1037, %v1045
    %v1074 = vmul.f32 %v1038, %v1045
    %v1075 = vmul.f32 %v1039, %v1045
    %v1076 = vmul.f32 %v1040, %v1045
    %v1077 = vmul.f32 %v1041, %v1045
    %v1078 = vsel %vm424, %v1046, 0.0
    %1079 = vadd.xlane.f32.xlu0 %v1078
    %v1080 = vpop.xlane.xlu0 %1079
    %v1081 = vsel %vm424, %v1047, 0.0
    %1082 = vadd.xlane.f32.xlu0 %v1081
    %v1083 = vpop.xlane.xlu0 %1082
    %v1084 = vsel %vm424, %v1048, 0.0
    %1085 = vadd.xlane.f32.xlu0 %v1084
    %v1086 = vpop.xlane.xlu0 %1085
    %v1087 = vsel %vm424, %v1049, 0.0
    %1088 = vadd.xlane.f32.xlu0 %v1087
    %v1089 = vpop.xlane.xlu0 %1088
    %v1090 = vsel %vm424, %v1050, 0.0
    %1091 = vadd.xlane.f32.xlu0 %v1090
    %v1092 = vpop.xlane.xlu0 %1091
    %v1093 = vsel %vm424, %v1051, 0.0
    %1094 = vadd.xlane.f32.xlu0 %v1093
    %v1095 = vpop.xlane.xlu0 %1094
    %v1096 = vsel %vm424, %v1052, 0.0
    %1097 = vadd.xlane.f32.xlu0 %v1096
    %v1098 = vpop.xlane.xlu0 %1097
    %v1099 = vsel %vm424, %v1053, 0.0
    %1100 = vadd.xlane.f32.xlu0 %v1099
    %v1101 = vpop.xlane.xlu0 %1100
    %v1102 = vsel %vm424, %v1054, 0.0
    %1103 = vadd.xlane.f32.xlu0 %v1102
    %v1104 = vpop.xlane.xlu0 %1103
    %v1105 = vsel %vm424, %v1055, 0.0
    %1106 = vadd.xlane.f32.xlu0 %v1105
    %v1107 = vpop.xlane.xlu0 %1106
    %v1108 = vsel %vm424, %v1056, 0.0
    %1109 = vadd.xlane.f32.xlu0 %v1108
    %v1110 = vpop.xlane.xlu0 %1109
    %v1111 = vsel %vm424, %v1057, 0.0
    %1112 = vadd.xlane.f32.xlu0 %v1111
    %v1113 = vpop.xlane.xlu0 %1112
    %v1114 = vsel %vm424, %v1058, 0.0
    %1115 = vadd.xlane.f32.xlu0 %v1114
    %v1116 = vpop.xlane.xlu0 %1115
    %v1117 = vsel %vm424, %v1059, 0.0
    %1118 = vadd.xlane.f32.xlu0 %v1117
    %v1119 = vpop.xlane.xlu0 %1118
    %v1120 = vsel %vm424, %v1060, 0.0
    %1121 = vadd.xlane.f32.xlu0 %v1120
    %v1122 = vpop.xlane.xlu0 %1121
    %v1123 = vsel %vm424, %v1061, 0.0
    %1124 = vadd.xlane.f32.xlu0 %v1123
    %v1125 = vpop.xlane.xlu0 %1124
    %v1126 = vsel %vm424, %v1062, 0.0
    %1127 = vadd.xlane.f32.xlu0 %v1126
    %v1128 = vpop.xlane.xlu0 %1127
    %v1129 = vsel %vm424, %v1063, 0.0
    %1130 = vadd.xlane.f32.xlu0 %v1129
    %v1131 = vpop.xlane.xlu0 %1130
    %v1132 = vsel %vm424, %v1064, 0.0
    %1133 = vadd.xlane.f32.xlu0 %v1132
    %v1134 = vpop.xlane.xlu0 %1133
    %v1135 = vsel %vm424, %v1065, 0.0
    %1136 = vadd.xlane.f32.xlu0 %v1135
    %v1137 = vpop.xlane.xlu0 %1136
    %v1138 = vsel %vm424, %v1066, 0.0
    %1139 = vadd.xlane.f32.xlu0 %v1138
    %v1140 = vpop.xlane.xlu0 %1139
    %v1141 = vsel %vm424, %v1067, 0.0
    %1142 = vadd.xlane.f32.xlu0 %v1141
    %v1143 = vpop.xlane.xlu0 %1142
    %v1144 = vsel %vm424, %v1068, 0.0
    %1145 = vadd.xlane.f32.xlu0 %v1144
    %v1146 = vpop.xlane.xlu0 %1145
    %v1147 = vsel %vm424, %v1069, 0.0
    %1148 = vadd.xlane.f32.xlu0 %v1147
    %v1149 = vpop.xlane.xlu0 %1148
    %v1150 = vsel %vm424, %v1070, 0.0
    %1151 = vadd.xlane.f32.xlu0 %v1150
    %v1152 = vpop.xlane.xlu0 %1151
    %v1153 = vsel %vm424, %v1071, 0.0
    %1154 = vadd.xlane.f32.xlu0 %v1153
    %v1155 = vpop.xlane.xlu0 %1154
    %v1156 = vsel %vm424, %v1072, 0.0
    %1157 = vadd.xlane.f32.xlu0 %v1156
    %v1158 = vpop.xlane.xlu0 %1157
    %v1159 = vsel %vm424, %v1073, 0.0
    %1160 = vadd.xlane.f32.xlu0 %v1159
    %v1161 = vpop.xlane.xlu0 %1160
    %v1162 = vsel %vm424, %v1074, 0.0
    %1163 = vadd.xlane.f32.xlu0 %v1162
    %v1164 = vpop.xlane.xlu0 %1163
    %v1165 = vsel %vm424, %v1075, 0.0
    %1166 = vadd.xlane.f32.xlu0 %v1165
    %v1167 = vpop.xlane.xlu0 %1166
    %v1168 = vsel %vm424, %v1076, 0.0
    %1169 = vadd.xlane.f32.xlu0 %v1168
    %v1170 = vpop.xlane.xlu0 %1169
    %v1171 = vsel %vm424, %v1077, 0.0
    %1172 = vadd.xlane.f32.xlu0 %v1171
    %v1173 = vpop.xlane.xlu0 %1172
    %s1174 = sld [smem:[#allocation2]]
    %v1175 = vstv %s1174
    %v1176 = vadd.f32 %v1080, %v1175
    %v1177 = vadd.f32 %v1083, %v1175
    %v1178 = vadd.f32 %v1086, %v1175
    %v1179 = vadd.f32 %v1089, %v1175
    %v1180 = vadd.f32 %v1092, %v1175
    %v1181 = vadd.f32 %v1095, %v1175
    %v1182 = vadd.f32 %v1098, %v1175
    %v1183 = vadd.f32 %v1101, %v1175
    %v1184 = vadd.f32 %v1104, %v1175
    %v1185 = vadd.f32 %v1107, %v1175
    %v1186 = vadd.f32 %v1110, %v1175
    %v1187 = vadd.f32 %v1113, %v1175
    %v1188 = vadd.f32 %v1116, %v1175
    %v1189 = vadd.f32 %v1119, %v1175
    %v1190 = vadd.f32 %v1122, %v1175
    %v1191 = vadd.f32 %v1125, %v1175
    %v1192 = vadd.f32 %v1128, %v1175
    %v1193 = vadd.f32 %v1131, %v1175
    %v1194 = vadd.f32 %v1134, %v1175
    %v1195 = vadd.f32 %v1137, %v1175
    %v1196 = vadd.f32 %v1140, %v1175
    %v1197 = vadd.f32 %v1143, %v1175
    %v1198 = vadd.f32 %v1146, %v1175
    %v1199 = vadd.f32 %v1149, %v1175
    %v1200 = vadd.f32 %v1152, %v1175
    %v1201 = vadd.f32 %v1155, %v1175
    %v1202 = vadd.f32 %v1158, %v1175
    %v1203 = vadd.f32 %v1161, %v1175
    %v1204 = vadd.f32 %v1164, %v1175
    %v1205 = vadd.f32 %v1167, %v1175
    %v1206 = vadd.f32 %v1170, %v1175
    %v1207 = vadd.f32 %v1173, %v1175
    %v1240 = vlaneseq
    %v1241 = vand.u32 %v1240, 127
    %v1242 = vlaneseq
    %v1243 = vshrl.u32 %v1242, 7
    %v1244 = vsub.s32 %v1241, %v1243
    %v1245 = vrot.slane %v1176, %v1244
    %v1246 = vadd.s32 %v1241, 4294967288
    %v1247 = vlaneseq
    %v1248 = vshrl.u32 %v1247, 7
    %v1249 = vsub.s32 %v1246, %v1248
    %v1250 = vrot.slane %v1177, %v1249
    %vm1251 = vcmask 130112
    %v1252 = vsel %vm1251, %v1250, %v1245
    %v1253 = vlaneseq
    %v1254 = vshrl.u32 %v1253, 7
    %v1255 = vsub.s32 %v1241, %v1254
    %v1256 = vrot.slane %v1178, %v1255
    %v1257 = vlaneseq
    %v1258 = vshrl.u32 %v1257, 7
    %v1259 = vsub.s32 %v1246, %v1258
    %v1260 = vrot.slane %v1179, %v1259
    %v1261 = vsel %vm1251, %v1260, %v1256
    %v1262 = vlaneseq
    %v1263 = vshrl.u32 %v1262, 7
    %v1264 = vsub.s32 %v1241, %v1263
    %v1265 = vrot.slane %v1180, %v1264
    %v1266 = vlaneseq
    %v1267 = vshrl.u32 %v1266, 7
    %v1268 = vsub.s32 %v1246, %v1267
    %v1269 = vrot.slane %v1181, %v1268
    %v1270 = vsel %vm1251, %v1269, %v1265
    %v1271 = vlaneseq
    %v1272 = vshrl.u32 %v1271, 7
    %v1273 = vsub.s32 %v1241, %v1272
    %v1274 = vrot.slane %v1182, %v1273
    %v1275 = vlaneseq
    %v1276 = vshrl.u32 %v1275, 7
    %v1277 = vsub.s32 %v1246, %v1276
    %v1278 = vrot.slane %v1183, %v1277
    %v1279 = vsel %vm1251, %v1278, %v1274
    %v1280 = vlaneseq
    %v1281 = vshrl.u32 %v1280, 7
    %v1282 = vsub.s32 %v1241, %v1281
    %v1283 = vrot.slane %v1184, %v1282
    %v1284 = vlaneseq
    %v1285 = vshrl.u32 %v1284, 7
    %v1286 = vsub.s32 %v1246, %v1285
    %v1287 = vrot.slane %v1185, %v1286
    %v1288 = vsel %vm1251, %v1287, %v1283
    %v1289 = vlaneseq
    %v1290 = vshrl.u32 %v1289, 7
    %v1291 = vsub.s32 %v1241, %v1290
    %v1292 = vrot.slane %v1186, %v1291
    %v1293 = vlaneseq
    %v1294 = vshrl.u32 %v1293, 7
    %v1295 = vsub.s32 %v1246, %v1294
    %v1296 = vrot.slane %v1187, %v1295
    %v1297 = vsel %vm1251, %v1296, %v1292
    %v1298 = vlaneseq
    %v1299 = vshrl.u32 %v1298, 7
    %v1300 = vsub.s32 %v1241, %v1299
    %v1301 = vrot.slane %v1188, %v1300
    %v1302 = vlaneseq
    %v1303 = vshrl.u32 %v1302, 7
    %v1304 = vsub.s32 %v1246, %v1303
    %v1305 = vrot.slane %v1189, %v1304
    %v1306 = vsel %vm1251, %v1305, %v1301
    %v1307 = vlaneseq
    %v1308 = vshrl.u32 %v1307, 7
    %v1309 = vsub.s32 %v1241, %v1308
    %v1310 = vrot.slane %v1190, %v1309
    %v1311 = vlaneseq
    %v1312 = vshrl.u32 %v1311, 7
    %v1313 = vsub.s32 %v1246, %v1312
    %v1314 = vrot.slane %v1191, %v1313
    %v1315 = vsel %vm1251, %v1314, %v1310
    %v1316 = vlaneseq
    %v1317 = vshrl.u32 %v1316, 7
    %v1318 = vsub.s32 %v1241, %v1317
    %v1319 = vrot.slane %v1192, %v1318
    %v1320 = vlaneseq
    %v1321 = vshrl.u32 %v1320, 7
    %v1322 = vsub.s32 %v1246, %v1321
    %v1323 = vrot.slane %v1193, %v1322
    %v1324 = vsel %vm1251, %v1323, %v1319
    %v1325 = vlaneseq
    %v1326 = vshrl.u32 %v1325, 7
    %v1327 = vsub.s32 %v1241, %v1326
    %v1328 = vrot.slane %v1194, %v1327
    %v1329 = vlaneseq
    %v1330 = vshrl.u32 %v1329, 7
    %v1331 = vsub.s32 %v1246, %v1330
    %v1332 = vrot.slane %v1195, %v1331
    %v1333 = vsel %vm1251, %v1332, %v1328
    %v1334 = vlaneseq
    %v1335 = vshrl.u32 %v1334, 7
    %v1336 = vsub.s32 %v1241, %v1335
    %v1337 = vrot.slane %v1196, %v1336
    %v1338 = vlaneseq
    %v1339 = vshrl.u32 %v1338, 7
    %v1340 = vsub.s32 %v1246, %v1339
    %v1341 = vrot.slane %v1197, %v1340
    %v1342 = vsel %vm1251, %v1341, %v1337
    %v1343 = vlaneseq
    %v1344 = vshrl.u32 %v1343, 7
    %v1345 = vsub.s32 %v1241, %v1344
    %v1346 = vrot.slane %v1198, %v1345
    %v1347 = vlaneseq
    %v1348 = vshrl.u32 %v1347, 7
    %v1349 = vsub.s32 %v1246, %v1348
    %v1350 = vrot.slane %v1199, %v1349
    %v1351 = vsel %vm1251, %v1350, %v1346
    %v1352 = vlaneseq
    %v1353 = vshrl.u32 %v1352, 7
    %v1354 = vsub.s32 %v1241, %v1353
    %v1355 = vrot.slane %v1200, %v1354
    %v1356 = vlaneseq
    %v1357 = vshrl.u32 %v1356, 7
    %v1358 = vsub.s32 %v1246, %v1357
    %v1359 = vrot.slane %v1201, %v1358
    %v1360 = vsel %vm1251, %v1359, %v1355
    %v1361 = vlaneseq
    %v1362 = vshrl.u32 %v1361, 7
    %v1363 = vsub.s32 %v1241, %v1362
    %v1364 = vrot.slane %v1202, %v1363
    %v1365 = vlaneseq
    %v1366 = vshrl.u32 %v1365, 7
    %v1367 = vsub.s32 %v1246, %v1366
    %v1368 = vrot.slane %v1203, %v1367
    %v1369 = vsel %vm1251, %v1368, %v1364
    %v1370 = vlaneseq
    %v1371 = vshrl.u32 %v1370, 7
    %v1372 = vsub.s32 %v1241, %v1371
    %v1373 = vrot.slane %v1204, %v1372
    %v1374 = vlaneseq
    %v1375 = vshrl.u32 %v1374, 7
    %v1376 = vsub.s32 %v1246, %v1375
    %v1377 = vrot.slane %v1205, %v1376
    %v1378 = vsel %vm1251, %v1377, %v1373
    %v1379 = vlaneseq
    %v1380 = vshrl.u32 %v1379, 7
    %v1381 = vsub.s32 %v1241, %v1380
    %v1382 = vrot.slane %v1206, %v1381
    %v1383 = vlaneseq
    %v1384 = vshrl.u32 %v1383, 7
    %v1385 = vsub.s32 %v1246, %v1384
    %v1386 = vrot.slane %v1207, %v1385
    %v1387 = vsel %vm1251, %v1386, %v1382
    %vm1388 = vcmask 1041409
    %v1389 = vsel %vm1388, %v1261, %v1252
    %vm1390 = vcmask 1042434
    %v1391 = vsel %vm1390, %v1270, %v1389
    %vm1392 = vcmask 1043459
    %v1393 = vsel %vm1392, %v1279, %v1391
    %vm1394 = vcmask 1044484
    %v1395 = vsel %vm1394, %v1288, %v1393
    %vm1396 = vcmask 1045509
    %v1397 = vsel %vm1396, %v1297, %v1395
    %vm1398 = vcmask 1046534
    %v1399 = vsel %vm1398, %v1306, %v1397
    %vm1400 = vcmask 1047559
    %v1401 = vsel %vm1400, %v1315, %v1399
    %v1402 = vsel %vm1388, %v1333, %v1324
    %v1403 = vsel %vm1390, %v1342, %v1402
    %v1404 = vsel %vm1392, %v1351, %v1403
    %v1405 = vsel %vm1394, %v1360, %v1404
    %v1406 = vsel %vm1396, %v1369, %v1405
    %v1407 = vsel %vm1398, %v1378, %v1406
    %v1408 = vsel %vm1400, %v1387, %v1407
    %vm1411 = vcmask 130048
    %v1412 = vsel %vm1411, %v1401, -inf
    %1413 = vmax.xlane.f32.xlu0 %v1412
    %v1414 = vpop.xlane.xlu0 %1413
    %v1415 = vsel %vm1411, %v1408, -inf
    %1416 = vmax.xlane.f32.xlu0 %v1415
    %v1417 = vpop.xlane.xlu0 %1416
    %v1420 = vlaneseq
    %v1421 = vshrl.u32 %v1420, 7
    %v1422 = vsub.s32 0, %v1421
    %v1423 = vrot.slane %v1414, %v1422
    %v1424 = vlaneseq
    %v1425 = vshrl.u32 %v1424, 7
    %v1426 = vsub.s32 1, %v1425
    %v1427 = vrot.slane %v1414, %v1426
    %v1428 = vlaneseq
    %v1429 = vshrl.u32 %v1428, 7
    %v1430 = vsub.s32 2, %v1429
    %v1431 = vrot.slane %v1414, %v1430
    %v1432 = vlaneseq
    %v1433 = vshrl.u32 %v1432, 7
    %v1434 = vsub.s32 3, %v1433
    %v1435 = vrot.slane %v1414, %v1434
    %v1436 = vlaneseq
    %v1437 = vshrl.u32 %v1436, 7
    %v1438 = vsub.s32 4, %v1437
    %v1439 = vrot.slane %v1414, %v1438
    %v1440 = vlaneseq
    %v1441 = vshrl.u32 %v1440, 7
    %v1442 = vsub.s32 5, %v1441
    %v1443 = vrot.slane %v1414, %v1442
    %v1444 = vlaneseq
    %v1445 = vshrl.u32 %v1444, 7
    %v1446 = vsub.s32 6, %v1445
    %v1447 = vrot.slane %v1414, %v1446
    %v1448 = vlaneseq
    %v1449 = vshrl.u32 %v1448, 7
    %v1450 = vsub.s32 7, %v1449
    %v1451 = vrot.slane %v1414, %v1450
    %v1452 = vlaneseq
    %v1453 = vshrl.u32 %v1452, 7
    %v1454 = vsub.s32 0, %v1453
    %v1455 = vrot.slane %v1417, %v1454
    %v1456 = vlaneseq
    %v1457 = vshrl.u32 %v1456, 7
    %v1458 = vsub.s32 1, %v1457
    %v1459 = vrot.slane %v1417, %v1458
    %v1460 = vlaneseq
    %v1461 = vshrl.u32 %v1460, 7
    %v1462 = vsub.s32 2, %v1461
    %v1463 = vrot.slane %v1417, %v1462
    %v1464 = vlaneseq
    %v1465 = vshrl.u32 %v1464, 7
    %v1466 = vsub.s32 3, %v1465
    %v1467 = vrot.slane %v1417, %v1466
    %v1468 = vlaneseq
    %v1469 = vshrl.u32 %v1468, 7
    %v1470 = vsub.s32 4, %v1469
    %v1471 = vrot.slane %v1417, %v1470
    %v1472 = vlaneseq
    %v1473 = vshrl.u32 %v1472, 7
    %v1474 = vsub.s32 5, %v1473
    %v1475 = vrot.slane %v1417, %v1474
    %v1476 = vlaneseq
    %v1477 = vshrl.u32 %v1476, 7
    %v1478 = vsub.s32 6, %v1477
    %v1479 = vrot.slane %v1417, %v1478
    %v1480 = vlaneseq
    %v1481 = vshrl.u32 %v1480, 7
    %v1482 = vsub.s32 7, %v1481
    %v1483 = vrot.slane %v1417, %v1482
    %v1500 = vsub.f32 %v1176, %v1423
    %v1501 = vsub.f32 %v1177, %v1423
    %v1502 = vsub.f32 %v1178, %v1427
    %v1503 = vsub.f32 %v1179, %v1427
    %v1504 = vsub.f32 %v1180, %v1431
    %v1505 = vsub.f32 %v1181, %v1431
    %v1506 = vsub.f32 %v1182, %v1435
    %v1507 = vsub.f32 %v1183, %v1435
    %v1508 = vsub.f32 %v1184, %v1439
    %v1509 = vsub.f32 %v1185, %v1439
    %v1510 = vsub.f32 %v1186, %v1443
    %v1511 = vsub.f32 %v1187, %v1443
    %v1512 = vsub.f32 %v1188, %v1447
    %v1513 = vsub.f32 %v1189, %v1447
    %v1514 = vsub.f32 %v1190, %v1451
    %v1515 = vsub.f32 %v1191, %v1451
    %v1516 = vsub.f32 %v1192, %v1455
    %v1517 = vsub.f32 %v1193, %v1455
    %v1518 = vsub.f32 %v1194, %v1459
    %v1519 = vsub.f32 %v1195, %v1459
    %v1520 = vsub.f32 %v1196, %v1463
    %v1521 = vsub.f32 %v1197, %v1463
    %v1522 = vsub.f32 %v1198, %v1467
    %v1523 = vsub.f32 %v1199, %v1467
    %v1524 = vsub.f32 %v1200, %v1471
    %v1525 = vsub.f32 %v1201, %v1471
    %v1526 = vsub.f32 %v1202, %v1475
    %v1527 = vsub.f32 %v1203, %v1475
    %v1528 = vsub.f32 %v1204, %v1479
    %v1529 = vsub.f32 %v1205, %v1479
    %v1530 = vsub.f32 %v1206, %v1483
    %v1531 = vsub.f32 %v1207, %v1483
    %v1532 = vmul.f32 %v1500, 1.442695
    %v1533 = vpow.pop %v1532
    %v1534 = vmul.f32 %v1501, 1.442695
    %v1535 = vpow.pop %v1534
    %v1536 = vmul.f32 %v1502, 1.442695
    %v1537 = vpow.pop %v1536
    %v1538 = vmul.f32 %v1503, 1.442695
    %v1539 = vpow.pop %v1538
    %v1540 = vmul.f32 %v1504, 1.442695
    %v1541 = vpow.pop %v1540
    %v1542 = vmul.f32 %v1505, 1.442695
    %v1543 = vpow.pop %v1542
    %v1544 = vmul.f32 %v1506, 1.442695
    %v1545 = vpow.pop %v1544
    %v1546 = vmul.f32 %v1507, 1.442695
    %v1547 = vpow.pop %v1546
    %v1548 = vmul.f32 %v1508, 1.442695
    %v1549 = vpow.pop %v1548
    %v1550 = vmul.f32 %v1509, 1.442695
    %v1551 = vpow.pop %v1550
    %v1552 = vmul.f32 %v1510, 1.442695
    %v1553 = vpow.pop %v1552
    %v1554 = vmul.f32 %v1511, 1.442695
    %v1555 = vpow.pop %v1554
    %v1556 = vmul.f32 %v1512, 1.442695
    %v1557 = vpow.pop %v1556
    %v1558 = vmul.f32 %v1513, 1.442695
    %v1559 = vpow.pop %v1558
    %v1560 = vmul.f32 %v1514, 1.442695
    %v1561 = vpow.pop %v1560
    %v1562 = vmul.f32 %v1515, 1.442695
    %v1563 = vpow.pop %v1562
    %v1564 = vmul.f32 %v1516, 1.442695
    %v1565 = vpow.pop %v1564
    %v1566 = vmul.f32 %v1517, 1.442695
    %v1567 = vpow.pop %v1566
    %v1568 = vmul.f32 %v1518, 1.442695
    %v1569 = vpow.pop %v1568
    %v1570 = vmul.f32 %v1519, 1.442695
    %v1571 = vpow.pop %v1570
    %v1572 = vmul.f32 %v1520, 1.442695
    %v1573 = vpow.pop %v1572
    %v1574 = vmul.f32 %v1521, 1.442695
    %v1575 = vpow.pop %v1574
    %v1576 = vmul.f32 %v1522, 1.442695
    %v1577 = vpow.pop %v1576
    %v1578 = vmul.f32 %v1523, 1.442695
    %v1579 = vpow.pop %v1578
    %v1580 = vmul.f32 %v1524, 1.442695
    %v1581 = vpow.pop %v1580
    %v1582 = vmul.f32 %v1525, 1.442695
    %v1583 = vpow.pop %v1582
    %v1584 = vmul.f32 %v1526, 1.442695
    %v1585 = vpow.pop %v1584
    %v1586 = vmul.f32 %v1527, 1.442695
    %v1587 = vpow.pop %v1586
    %v1588 = vmul.f32 %v1528, 1.442695
    %v1589 = vpow.pop %v1588
    %v1590 = vmul.f32 %v1529, 1.442695
    %v1591 = vpow.pop %v1590
    %v1592 = vmul.f32 %v1530, 1.442695
    %v1593 = vpow.pop %v1592
    %v1594 = vmul.f32 %v1531, 1.442695
    %v1595 = vpow.pop %v1594
    %1628 = vset.pattern.permute.xlu0 0
    %1629 = vperm.xlu0 %1628, %v1533
    %v1630 = vpop.permute.xlu0 %1629
    %1631 = vset.pattern.permute.xlu0 0
    %1632 = vperm.xlu0 %1631, %v1535
    %v1633 = vpop.permute.xlu0 %1632
    %1634 = vset.pattern.permute.xlu0 0
    %1635 = vperm.xlu0 %1634, %v1537
    %v1636 = vpop.permute.xlu0 %1635
    %1637 = vset.pattern.permute.xlu0 0
    %1638 = vperm.xlu0 %1637, %v1539
    %v1639 = vpop.permute.xlu0 %1638
    %1640 = vset.pattern.permute.xlu0 0
    %1641 = vperm.xlu0 %1640, %v1541
    %v1642 = vpop.permute.xlu0 %1641
    %1643 = vset.pattern.permute.xlu0 0
    %1644 = vperm.xlu0 %1643, %v1543
    %v1645 = vpop.permute.xlu0 %1644
    %1646 = vset.pattern.permute.xlu0 0
    %1647 = vperm.xlu0 %1646, %v1545
    %v1648 = vpop.permute.xlu0 %1647
    %1649 = vset.pattern.permute.xlu0 0
    %1650 = vperm.xlu0 %1649, %v1547
    %v1651 = vpop.permute.xlu0 %1650
    %1652 = vset.pattern.permute.xlu0 0
    %1653 = vperm.xlu0 %1652, %v1549
    %v1654 = vpop.permute.xlu0 %1653
    %1655 = vset.pattern.permute.xlu0 0
    %1656 = vperm.xlu0 %1655, %v1551
    %v1657 = vpop.permute.xlu0 %1656
    %1658 = vset.pattern.permute.xlu0 0
    %1659 = vperm.xlu0 %1658, %v1553
    %v1660 = vpop.permute.xlu0 %1659
    %1661 = vset.pattern.permute.xlu0 0
    %1662 = vperm.xlu0 %1661, %v1555
    %v1663 = vpop.permute.xlu0 %1662
    %1664 = vset.pattern.permute.xlu0 0
    %1665 = vperm.xlu0 %1664, %v1557
    %v1666 = vpop.permute.xlu0 %1665
    %1667 = vset.pattern.permute.xlu0 0
    %1668 = vperm.xlu0 %1667, %v1559
    %v1669 = vpop.permute.xlu0 %1668
    %1670 = vset.pattern.permute.xlu0 0
    %1671 = vperm.xlu0 %1670, %v1561
    %v1672 = vpop.permute.xlu0 %1671
    %1673 = vset.pattern.permute.xlu0 0
    %1674 = vperm.xlu0 %1673, %v1563
    %v1675 = vpop.permute.xlu0 %1674
    %1676 = vset.pattern.permute.xlu0 0
    %1677 = vperm.xlu0 %1676, %v1565
    %v1678 = vpop.permute.xlu0 %1677
    %1679 = vset.pattern.permute.xlu0 0
    %1680 = vperm.xlu0 %1679, %v1567
    %v1681 = vpop.permute.xlu0 %1680
    %1682 = vset.pattern.permute.xlu0 0
    %1683 = vperm.xlu0 %1682, %v1569
    %v1684 = vpop.permute.xlu0 %1683
    %1685 = vset.pattern.permute.xlu0 0
    %1686 = vperm.xlu0 %1685, %v1571
    %v1687 = vpop.permute.xlu0 %1686
    %1688 = vset.pattern.permute.xlu0 0
    %1689 = vperm.xlu0 %1688, %v1573
    %v1690 = vpop.permute.xlu0 %1689
    %1691 = vset.pattern.permute.xlu0 0
    %1692 = vperm.xlu0 %1691, %v1575
    %v1693 = vpop.permute.xlu0 %1692
    %1694 = vset.pattern.permute.xlu0 0
    %1695 = vperm.xlu0 %1694, %v1577
    %v1696 = vpop.permute.xlu0 %1695
    %1697 = vset.pattern.permute.xlu0 0
    %1698 = vperm.xlu0 %1697, %v1579
    %v1699 = vpop.permute.xlu0 %1698
    %1700 = vset.pattern.permute.xlu0 0
    %1701 = vperm.xlu0 %1700, %v1581
    %v1702 = vpop.permute.xlu0 %1701
    %1703 = vset.pattern.permute.xlu0 0
    %1704 = vperm.xlu0 %1703, %v1583
    %v1705 = vpop.permute.xlu0 %1704
    %1706 = vset.pattern.permute.xlu0 0
    %1707 = vperm.xlu0 %1706, %v1585
    %v1708 = vpop.permute.xlu0 %1707
    %1709 = vset.pattern.permute.xlu0 0
    %1710 = vperm.xlu0 %1709, %v1587
    %v1711 = vpop.permute.xlu0 %1710
    %1712 = vset.pattern.permute.xlu0 0
    %1713 = vperm.xlu0 %1712, %v1589
    %v1714 = vpop.permute.xlu0 %1713
    %1715 = vset.pattern.permute.xlu0 0
    %1716 = vperm.xlu0 %1715, %v1591
    %v1717 = vpop.permute.xlu0 %1716
    %1718 = vset.pattern.permute.xlu0 0
    %1719 = vperm.xlu0 %1718, %v1593
    %v1720 = vpop.permute.xlu0 %1719
    %1721 = vset.pattern.permute.xlu0 0
    %1722 = vperm.xlu0 %1721, %v1595
    %v1723 = vpop.permute.xlu0 %1722
    %v1724 = vlaneseq
    %v1725 = vshrl.u32 %v1724, 7
    %v1726 = vsub.s32 %v1241, %v1725
    %v1727 = vrot.slane %v1630, %v1726
    %v1728 = vlaneseq
    %v1729 = vshrl.u32 %v1728, 7
    %v1730 = vsub.s32 %v1246, %v1729
    %v1731 = vrot.slane %v1633, %v1730
    %v1732 = vsel %vm1251, %v1731, %v1727
    %v1733 = vlaneseq
    %v1734 = vshrl.u32 %v1733, 7
    %v1735 = vsub.s32 %v1241, %v1734
    %v1736 = vrot.slane %v1636, %v1735
    %v1737 = vlaneseq
    %v1738 = vshrl.u32 %v1737, 7
    %v1739 = vsub.s32 %v1246, %v1738
    %v1740 = vrot.slane %v1639, %v1739
    %v1741 = vsel %vm1251, %v1740, %v1736
    %v1742 = vlaneseq
    %v1743 = vshrl.u32 %v1742, 7
    %v1744 = vsub.s32 %v1241, %v1743
    %v1745 = vrot.slane %v1642, %v1744
    %v1746 = vlaneseq
    %v1747 = vshrl.u32 %v1746, 7
    %v1748 = vsub.s32 %v1246, %v1747
    %v1749 = vrot.slane %v1645, %v1748
    %v1750 = vsel %vm1251, %v1749, %v1745
    %v1751 = vlaneseq
    %v1752 = vshrl.u32 %v1751, 7
    %v1753 = vsub.s32 %v1241, %v1752
    %v1754 = vrot.slane %v1648, %v1753
    %v1755 = vlaneseq
    %v1756 = vshrl.u32 %v1755, 7
    %v1757 = vsub.s32 %v1246, %v1756
    %v1758 = vrot.slane %v1651, %v1757
    %v1759 = vsel %vm1251, %v1758, %v1754
    %v1760 = vlaneseq
    %v1761 = vshrl.u32 %v1760, 7
    %v1762 = vsub.s32 %v1241, %v1761
    %v1763 = vrot.slane %v1654, %v1762
    %v1764 = vlaneseq
    %v1765 = vshrl.u32 %v1764, 7
    %v1766 = vsub.s32 %v1246, %v1765
    %v1767 = vrot.slane %v1657, %v1766
    %v1768 = vsel %vm1251, %v1767, %v1763
    %v1769 = vlaneseq
    %v1770 = vshrl.u32 %v1769, 7
    %v1771 = vsub.s32 %v1241, %v1770
    %v1772 = vrot.slane %v1660, %v1771
    %v1773 = vlaneseq
    %v1774 = vshrl.u32 %v1773, 7
    %v1775 = vsub.s32 %v1246, %v1774
    %v1776 = vrot.slane %v1663, %v1775
    %v1777 = vsel %vm1251, %v1776, %v1772
    %v1778 = vlaneseq
    %v1779 = vshrl.u32 %v1778, 7
    %v1780 = vsub.s32 %v1241, %v1779
    %v1781 = vrot.slane %v1666, %v1780
    %v1782 = vlaneseq
    %v1783 = vshrl.u32 %v1782, 7
    %v1784 = vsub.s32 %v1246, %v1783
    %v1785 = vrot.slane %v1669, %v1784
    %v1786 = vsel %vm1251, %v1785, %v1781
    %v1787 = vlaneseq
    %v1788 = vshrl.u32 %v1787, 7
    %v1789 = vsub.s32 %v1241, %v1788
    %v1790 = vrot.slane %v1672, %v1789
    %v1791 = vlaneseq
    %v1792 = vshrl.u32 %v1791, 7
    %v1793 = vsub.s32 %v1246, %v1792
    %v1794 = vrot.slane %v1675, %v1793
    %v1795 = vsel %vm1251, %v1794, %v1790
    %v1796 = vlaneseq
    %v1797 = vshrl.u32 %v1796, 7
    %v1798 = vsub.s32 %v1241, %v1797
    %v1799 = vrot.slane %v1678, %v1798
    %v1800 = vlaneseq
    %v1801 = vshrl.u32 %v1800, 7
    %v1802 = vsub.s32 %v1246, %v1801
    %v1803 = vrot.slane %v1681, %v1802
    %v1804 = vsel %vm1251, %v1803, %v1799
    %v1805 = vlaneseq
    %v1806 = vshrl.u32 %v1805, 7
    %v1807 = vsub.s32 %v1241, %v1806
    %v1808 = vrot.slane %v1684, %v1807
    %v1809 = vlaneseq
    %v1810 = vshrl.u32 %v1809, 7
    %v1811 = vsub.s32 %v1246, %v1810
    %v1812 = vrot.slane %v1687, %v1811
    %v1813 = vsel %vm1251, %v1812, %v1808
    %v1814 = vlaneseq
    %v1815 = vshrl.u32 %v1814, 7
    %v1816 = vsub.s32 %v1241, %v1815
    %v1817 = vrot.slane %v1690, %v1816
    %v1818 = vlaneseq
    %v1819 = vshrl.u32 %v1818, 7
    %v1820 = vsub.s32 %v1246, %v1819
    %v1821 = vrot.slane %v1693, %v1820
    %v1822 = vsel %vm1251, %v1821, %v1817
    %v1823 = vlaneseq
    %v1824 = vshrl.u32 %v1823, 7
    %v1825 = vsub.s32 %v1241, %v1824
    %v1826 = vrot.slane %v1696, %v1825
    %v1827 = vlaneseq
    %v1828 = vshrl.u32 %v1827, 7
    %v1829 = vsub.s32 %v1246, %v1828
    %v1830 = vrot.slane %v1699, %v1829
    %v1831 = vsel %vm1251, %v1830, %v1826
    %v1832 = vlaneseq
    %v1833 = vshrl.u32 %v1832, 7
    %v1834 = vsub.s32 %v1241, %v1833
    %v1835 = vrot.slane %v1702, %v1834
    %v1836 = vlaneseq
    %v1837 = vshrl.u32 %v1836, 7
    %v1838 = vsub.s32 %v1246, %v1837
    %v1839 = vrot.slane %v1705, %v1838
    %v1840 = vsel %vm1251, %v1839, %v1835
    %v1841 = vlaneseq
    %v1842 = vshrl.u32 %v1841, 7
    %v1843 = vsub.s32 %v1241, %v1842
    %v1844 = vrot.slane %v1708, %v1843
    %v1845 = vlaneseq
    %v1846 = vshrl.u32 %v1845, 7
    %v1847 = vsub.s32 %v1246, %v1846
    %v1848 = vrot.slane %v1711, %v1847
    %v1849 = vsel %vm1251, %v1848, %v1844
    %v1850 = vlaneseq
    %v1851 = vshrl.u32 %v1850, 7
    %v1852 = vsub.s32 %v1241, %v1851
    %v1853 = vrot.slane %v1714, %v1852
    %v1854 = vlaneseq
    %v1855 = vshrl.u32 %v1854, 7
    %v1856 = vsub.s32 %v1246, %v1855
    %v1857 = vrot.slane %v1717, %v1856
    %v1858 = vsel %vm1251, %v1857, %v1853
    %v1859 = vlaneseq
    %v1860 = vshrl.u32 %v1859, 7
    %v1861 = vsub.s32 %v1241, %v1860
    %v1862 = vrot.slane %v1720, %v1861
    %v1863 = vlaneseq
    %v1864 = vshrl.u32 %v1863, 7
    %v1865 = vsub.s32 %v1246, %v1864
    %v1866 = vrot.slane %v1723, %v1865
    %v1867 = vsel %vm1251, %v1866, %v1862
    %v1868 = vsel %vm1388, %v1741, %v1732
    %v1869 = vsel %vm1390, %v1750, %v1868
    %v1870 = vsel %vm1392, %v1759, %v1869
    %v1871 = vsel %vm1394, %v1768, %v1870
    %v1872 = vsel %vm1396, %v1777, %v1871
    %v1873 = vsel %vm1398, %v1786, %v1872
    %v1874 = vsel %vm1400, %v1795, %v1873
    %v1875 = vsel %vm1388, %v1813, %v1804
    %v1876 = vsel %vm1390, %v1822, %v1875
    %v1877 = vsel %vm1392, %v1831, %v1876
    %v1878 = vsel %vm1394, %v1840, %v1877
    %v1879 = vsel %vm1396, %v1849, %v1878
    %v1880 = vsel %vm1398, %v1858, %v1879
    %v1881 = vsel %vm1400, %v1867, %v1880
    %v1884 = vsel %vm1411, %v1874, 0.0
    %1885 = vadd.xlane.f32.xlu0 %v1884
    %v1886 = vpop.xlane.xlu0 %1885
    %v1887 = vsel %vm1411, %v1881, 0.0
    %1888 = vadd.xlane.f32.xlu0 %v1887
    %v1889 = vpop.xlane.xlu0 %1888
    %v1892 = vlaneseq
    %v1893 = vshrl.u32 %v1892, 7
    %v1894 = vsub.s32 0, %v1893
    %v1895 = vrot.slane %v1886, %v1894
    %v1896 = vlaneseq
    %v1897 = vshrl.u32 %v1896, 7
    %v1898 = vsub.s32 1, %v1897
    %v1899 = vrot.slane %v1886, %v1898
    %v1900 = vlaneseq
    %v1901 = vshrl.u32 %v1900, 7
    %v1902 = vsub.s32 2, %v1901
    %v1903 = vrot.slane %v1886, %v1902
    %v1904 = vlaneseq
    %v1905 = vshrl.u32 %v1904, 7
    %v1906 = vsub.s32 3, %v1905
    %v1907 = vrot.slane %v1886, %v1906
    %v1908 = vlaneseq
    %v1909 = vshrl.u32 %v1908, 7
    %v1910 = vsub.s32 4, %v1909
    %v1911 = vrot.slane %v1886, %v1910
    %v1912 = vlaneseq
    %v1913 = vshrl.u32 %v1912, 7
    %v1914 = vsub.s32 5, %v1913
    %v1915 = vrot.slane %v1886, %v1914
    %v1916 = vlaneseq
    %v1917 = vshrl.u32 %v1916, 7
    %v1918 = vsub.s32 6, %v1917
    %v1919 = vrot.slane %v1886, %v1918
    %v1920 = vlaneseq
    %v1921 = vshrl.u32 %v1920, 7
    %v1922 = vsub.s32 7, %v1921
    %v1923 = vrot.slane %v1886, %v1922
    %v1924 = vlaneseq
    %v1925 = vshrl.u32 %v1924, 7
    %v1926 = vsub.s32 0, %v1925
    %v1927 = vrot.slane %v1889, %v1926
    %v1928 = vlaneseq
    %v1929 = vshrl.u32 %v1928, 7
    %v1930 = vsub.s32 1, %v1929
    %v1931 = vrot.slane %v1889, %v1930
    %v1932 = vlaneseq
    %v1933 = vshrl.u32 %v1932, 7
    %v1934 = vsub.s32 2, %v1933
    %v1935 = vrot.slane %v1889, %v1934
    %v1936 = vlaneseq
    %v1937 = vshrl.u32 %v1936, 7
    %v1938 = vsub.s32 3, %v1937
    %v1939 = vrot.slane %v1889, %v1938
    %v1940 = vlaneseq
    %v1941 = vshrl.u32 %v1940, 7
    %v1942 = vsub.s32 4, %v1941
    %v1943 = vrot.slane %v1889, %v1942
    %v1944 = vlaneseq
    %v1945 = vshrl.u32 %v1944, 7
    %v1946 = vsub.s32 5, %v1945
    %v1947 = vrot.slane %v1889, %v1946
    %v1948 = vlaneseq
    %v1949 = vshrl.u32 %v1948, 7
    %v1950 = vsub.s32 6, %v1949
    %v1951 = vrot.slane %v1889, %v1950
    %v1952 = vlaneseq
    %v1953 = vshrl.u32 %v1952, 7
    %v1954 = vsub.s32 7, %v1953
    %v1955 = vrot.slane %v1889, %v1954
    %v1972 = vrcp.pop %v1895
    %v1973 = vmul.f32 %v1533, %v1972
    %v1974 = vmul.f32 %v1535, %v1972
    %v1975 = vrcp.pop %v1899
    %v1976 = vmul.f32 %v1537, %v1975
    %v1977 = vmul.f32 %v1539, %v1975
    %v1978 = vrcp.pop %v1903
    %v1979 = vmul.f32 %v1541, %v1978
    %v1980 = vmul.f32 %v1543, %v1978
    %v1981 = vrcp.pop %v1907
    %v1982 = vmul.f32 %v1545, %v1981
    %v1983 = vmul.f32 %v1547, %v1981
    %v1984 = vrcp.pop %v1911
    %v1985 = vmul.f32 %v1549, %v1984
    %v1986 = vmul.f32 %v1551, %v1984
    %v1987 = vrcp.pop %v1915
    %v1988 = vmul.f32 %v1553, %v1987
    %v1989 = vmul.f32 %v1555, %v1987
    %v1990 = vrcp.pop %v1919
    %v1991 = vmul.f32 %v1557, %v1990
    %v1992 = vmul.f32 %v1559, %v1990
    %v1993 = vrcp.pop %v1923
    %v1994 = vmul.f32 %v1561, %v1993
    %v1995 = vmul.f32 %v1563, %v1993
    %v1996 = vrcp.pop %v1927
    %v1997 = vmul.f32 %v1565, %v1996
    %v1998 = vmul.f32 %v1567, %v1996
    %v1999 = vrcp.pop %v1931
    %v2000 = vmul.f32 %v1569, %v1999
    %v2001 = vmul.f32 %v1571, %v1999
    %v2002 = vrcp.pop %v1935
    %v2003 = vmul.f32 %v1573, %v2002
    %v2004 = vmul.f32 %v1575, %v2002
    %v2005 = vrcp.pop %v1939
    %v2006 = vmul.f32 %v1577, %v2005
    %v2007 = vmul.f32 %v1579, %v2005
    %v2008 = vrcp.pop %v1943
    %v2009 = vmul.f32 %v1581, %v2008
    %v2010 = vmul.f32 %v1583, %v2008
    %v2011 = vrcp.pop %v1947
    %v2012 = vmul.f32 %v1585, %v2011
    %v2013 = vmul.f32 %v1587, %v2011
    %v2014 = vrcp.pop %v1951
    %v2015 = vmul.f32 %v1589, %v2014
    %v2016 = vmul.f32 %v1591, %v2014
    %v2017 = vrcp.pop %v1955
    %v2018 = vmul.f32 %v1593, %v2017
    %v2019 = vmul.f32 %v1595, %v2017
    %2052 = vset.pattern.permute.xlu0 0
    %2053 = vperm.xlu0 %2052, %v1973
    %v2054 = vpop.permute.xlu0 %2053
    %2055 = vset.pattern.permute.xlu0 0
    %2056 = vperm.xlu0 %2055, %v1974
    %v2057 = vpop.permute.xlu0 %2056
    %2058 = vset.pattern.permute.xlu0 0
    %2059 = vperm.xlu0 %2058, %v1976
    %v2060 = vpop.permute.xlu0 %2059
    %2061 = vset.pattern.permute.xlu0 0
    %2062 = vperm.xlu0 %2061, %v1977
    %v2063 = vpop.permute.xlu0 %2062
    %2064 = vset.pattern.permute.xlu0 0
    %2065 = vperm.xlu0 %2064, %v1979
    %v2066 = vpop.permute.xlu0 %2065
    %2067 = vset.pattern.permute.xlu0 0
    %2068 = vperm.xlu0 %2067, %v1980
    %v2069 = vpop.permute.xlu0 %2068
    %2070 = vset.pattern.permute.xlu0 0
    %2071 = vperm.xlu0 %2070, %v1982
    %v2072 = vpop.permute.xlu0 %2071
    %2073 = vset.pattern.permute.xlu0 0
    %2074 = vperm.xlu0 %2073, %v1983
    %v2075 = vpop.permute.xlu0 %2074
    %2076 = vset.pattern.permute.xlu0 0
    %2077 = vperm.xlu0 %2076, %v1985
    %v2078 = vpop.permute.xlu0 %2077
    %2079 = vset.pattern.permute.xlu0 0
    %2080 = vperm.xlu0 %2079, %v1986
    %v2081 = vpop.permute.xlu0 %2080
    %2082 = vset.pattern.permute.xlu0 0
    %2083 = vperm.xlu0 %2082, %v1988
    %v2084 = vpop.permute.xlu0 %2083
    %2085 = vset.pattern.permute.xlu0 0
    %2086 = vperm.xlu0 %2085, %v1989
    %v2087 = vpop.permute.xlu0 %2086
    %2088 = vset.pattern.permute.xlu0 0
    %2089 = vperm.xlu0 %2088, %v1991
    %v2090 = vpop.permute.xlu0 %2089
    %2091 = vset.pattern.permute.xlu0 0
    %2092 = vperm.xlu0 %2091, %v1992
    %v2093 = vpop.permute.xlu0 %2092
    %2094 = vset.pattern.permute.xlu0 0
    %2095 = vperm.xlu0 %2094, %v1994
    %v2096 = vpop.permute.xlu0 %2095
    %2097 = vset.pattern.permute.xlu0 0
    %2098 = vperm.xlu0 %2097, %v1995
    %v2099 = vpop.permute.xlu0 %2098
    %2100 = vset.pattern.permute.xlu0 0
    %2101 = vperm.xlu0 %2100, %v1997
    %v2102 = vpop.permute.xlu0 %2101
    %2103 = vset.pattern.permute.xlu0 0
    %2104 = vperm.xlu0 %2103, %v1998
    %v2105 = vpop.permute.xlu0 %2104
    %2106 = vset.pattern.permute.xlu0 0
    %2107 = vperm.xlu0 %2106, %v2000
    %v2108 = vpop.permute.xlu0 %2107
    %2109 = vset.pattern.permute.xlu0 0
    %2110 = vperm.xlu0 %2109, %v2001
    %v2111 = vpop.permute.xlu0 %2110
    %2112 = vset.pattern.permute.xlu0 0
    %2113 = vperm.xlu0 %2112, %v2003
    %v2114 = vpop.permute.xlu0 %2113
    %2115 = vset.pattern.permute.xlu0 0
    %2116 = vperm.xlu0 %2115, %v2004
    %v2117 = vpop.permute.xlu0 %2116
    %2118 = vset.pattern.permute.xlu0 0
    %2119 = vperm.xlu0 %2118, %v2006
    %v2120 = vpop.permute.xlu0 %2119
    %2121 = vset.pattern.permute.xlu0 0
    %2122 = vperm.xlu0 %2121, %v2007
    %v2123 = vpop.permute.xlu0 %2122
    %2124 = vset.pattern.permute.xlu0 0
    %2125 = vperm.xlu0 %2124, %v2009
    %v2126 = vpop.permute.xlu0 %2125
    %2127 = vset.pattern.permute.xlu0 0
    %2128 = vperm.xlu0 %2127, %v2010
    %v2129 = vpop.permute.xlu0 %2128
    %2130 = vset.pattern.permute.xlu0 0
    %2131 = vperm.xlu0 %2130, %v2012
    %v2132 = vpop.permute.xlu0 %2131
    %2133 = vset.pattern.permute.xlu0 0
    %2134 = vperm.xlu0 %2133, %v2013
    %v2135 = vpop.permute.xlu0 %2134
    %2136 = vset.pattern.permute.xlu0 0
    %2137 = vperm.xlu0 %2136, %v2015
    %v2138 = vpop.permute.xlu0 %2137
    %2139 = vset.pattern.permute.xlu0 0
    %2140 = vperm.xlu0 %2139, %v2016
    %v2141 = vpop.permute.xlu0 %2140
    %2142 = vset.pattern.permute.xlu0 0
    %2143 = vperm.xlu0 %2142, %v2018
    %v2144 = vpop.permute.xlu0 %2143
    %2145 = vset.pattern.permute.xlu0 0
    %2146 = vperm.xlu0 %2145, %v2019
    %v2147 = vpop.permute.xlu0 %2146
    %v2148 = vlaneseq
    %v2149 = vshrl.u32 %v2148, 7
    %v2150 = vsub.s32 %v1241, %v2149
    %v2151 = vrot.slane %v2054, %v2150
    %v2152 = vlaneseq
    %v2153 = vshrl.u32 %v2152, 7
    %v2154 = vsub.s32 %v1246, %v2153
    %v2155 = vrot.slane %v2057, %v2154
    %v2156 = vsel %vm1251, %v2155, %v2151
    %v2157 = vlaneseq
    %v2158 = vshrl.u32 %v2157, 7
    %v2159 = vsub.s32 %v1241, %v2158
    %v2160 = vrot.slane %v2060, %v2159
    %v2161 = vlaneseq
    %v2162 = vshrl.u32 %v2161, 7
    %v2163 = vsub.s32 %v1246, %v2162
    %v2164 = vrot.slane %v2063, %v2163
    %v2165 = vsel %vm1251, %v2164, %v2160
    %v2166 = vlaneseq
    %v2167 = vshrl.u32 %v2166, 7
    %v2168 = vsub.s32 %v1241, %v2167
    %v2169 = vrot.slane %v2066, %v2168
    %v2170 = vlaneseq
    %v2171 = vshrl.u32 %v2170, 7
    %v2172 = vsub.s32 %v1246, %v2171
    %v2173 = vrot.slane %v2069, %v2172
    %v2174 = vsel %vm1251, %v2173, %v2169
    %v2175 = vlaneseq
    %v2176 = vshrl.u32 %v2175, 7
    %v2177 = vsub.s32 %v1241, %v2176
    %v2178 = vrot.slane %v2072, %v2177
    %v2179 = vlaneseq
    %v2180 = vshrl.u32 %v2179, 7
    %v2181 = vsub.s32 %v1246, %v2180
    %v2182 = vrot.slane %v2075, %v2181
    %v2183 = vsel %vm1251, %v2182, %v2178
    %v2184 = vlaneseq
    %v2185 = vshrl.u32 %v2184, 7
    %v2186 = vsub.s32 %v1241, %v2185
    %v2187 = vrot.slane %v2078, %v2186
    %v2188 = vlaneseq
    %v2189 = vshrl.u32 %v2188, 7
    %v2190 = vsub.s32 %v1246, %v2189
    %v2191 = vrot.slane %v2081, %v2190
    %v2192 = vsel %vm1251, %v2191, %v2187
    %v2193 = vlaneseq
    %v2194 = vshrl.u32 %v2193, 7
    %v2195 = vsub.s32 %v1241, %v2194
    %v2196 = vrot.slane %v2084, %v2195
    %v2197 = vlaneseq
    %v2198 = vshrl.u32 %v2197, 7
    %v2199 = vsub.s32 %v1246, %v2198
    %v2200 = vrot.slane %v2087, %v2199
    %v2201 = vsel %vm1251, %v2200, %v2196
    %v2202 = vlaneseq
    %v2203 = vshrl.u32 %v2202, 7
    %v2204 = vsub.s32 %v1241, %v2203
    %v2205 = vrot.slane %v2090, %v2204
    %v2206 = vlaneseq
    %v2207 = vshrl.u32 %v2206, 7
    %v2208 = vsub.s32 %v1246, %v2207
    %v2209 = vrot.slane %v2093, %v2208
    %v2210 = vsel %vm1251, %v2209, %v2205
    %v2211 = vlaneseq
    %v2212 = vshrl.u32 %v2211, 7
    %v2213 = vsub.s32 %v1241, %v2212
    %v2214 = vrot.slane %v2096, %v2213
    %v2215 = vlaneseq
    %v2216 = vshrl.u32 %v2215, 7
    %v2217 = vsub.s32 %v1246, %v2216
    %v2218 = vrot.slane %v2099, %v2217
    %v2219 = vsel %vm1251, %v2218, %v2214
    %v2220 = vlaneseq
    %v2221 = vshrl.u32 %v2220, 7
    %v2222 = vsub.s32 %v1241, %v2221
    %v2223 = vrot.slane %v2102, %v2222
    %v2224 = vlaneseq
    %v2225 = vshrl.u32 %v2224, 7
    %v2226 = vsub.s32 %v1246, %v2225
    %v2227 = vrot.slane %v2105, %v2226
    %v2228 = vsel %vm1251, %v2227, %v2223
    %v2229 = vlaneseq
    %v2230 = vshrl.u32 %v2229, 7
    %v2231 = vsub.s32 %v1241, %v2230
    %v2232 = vrot.slane %v2108, %v2231
    %v2233 = vlaneseq
    %v2234 = vshrl.u32 %v2233, 7
    %v2235 = vsub.s32 %v1246, %v2234
    %v2236 = vrot.slane %v2111, %v2235
    %v2237 = vsel %vm1251, %v2236, %v2232
    %v2238 = vlaneseq
    %v2239 = vshrl.u32 %v2238, 7
    %v2240 = vsub.s32 %v1241, %v2239
    %v2241 = vrot.slane %v2114, %v2240
    %v2242 = vlaneseq
    %v2243 = vshrl.u32 %v2242, 7
    %v2244 = vsub.s32 %v1246, %v2243
    %v2245 = vrot.slane %v2117, %v2244
    %v2246 = vsel %vm1251, %v2245, %v2241
    %v2247 = vlaneseq
    %v2248 = vshrl.u32 %v2247, 7
    %v2249 = vsub.s32 %v1241, %v2248
    %v2250 = vrot.slane %v2120, %v2249
    %v2251 = vlaneseq
    %v2252 = vshrl.u32 %v2251, 7
    %v2253 = vsub.s32 %v1246, %v2252
    %v2254 = vrot.slane %v2123, %v2253
    %v2255 = vsel %vm1251, %v2254, %v2250
    %v2256 = vlaneseq
    %v2257 = vshrl.u32 %v2256, 7
    %v2258 = vsub.s32 %v1241, %v2257
    %v2259 = vrot.slane %v2126, %v2258
    %v2260 = vlaneseq
    %v2261 = vshrl.u32 %v2260, 7
    %v2262 = vsub.s32 %v1246, %v2261
    %v2263 = vrot.slane %v2129, %v2262
    %v2264 = vsel %vm1251, %v2263, %v2259
    %v2265 = vlaneseq
    %v2266 = vshrl.u32 %v2265, 7
    %v2267 = vsub.s32 %v1241, %v2266
    %v2268 = vrot.slane %v2132, %v2267
    %v2269 = vlaneseq
    %v2270 = vshrl.u32 %v2269, 7
    %v2271 = vsub.s32 %v1246, %v2270
    %v2272 = vrot.slane %v2135, %v2271
    %v2273 = vsel %vm1251, %v2272, %v2268
    %v2274 = vlaneseq
    %v2275 = vshrl.u32 %v2274, 7
    %v2276 = vsub.s32 %v1241, %v2275
    %v2277 = vrot.slane %v2138, %v2276
    %v2278 = vlaneseq
    %v2279 = vshrl.u32 %v2278, 7
    %v2280 = vsub.s32 %v1246, %v2279
    %v2281 = vrot.slane %v2141, %v2280
    %v2282 = vsel %vm1251, %v2281, %v2277
    %v2283 = vlaneseq
    %v2284 = vshrl.u32 %v2283, 7
    %v2285 = vsub.s32 %v1241, %v2284
    %v2286 = vrot.slane %v2144, %v2285
    %v2287 = vlaneseq
    %v2288 = vshrl.u32 %v2287, 7
    %v2289 = vsub.s32 %v1246, %v2288
    %v2290 = vrot.slane %v2147, %v2289
    %v2291 = vsel %vm1251, %v2290, %v2286
    %v2292 = vsel %vm1388, %v2165, %v2156
    %v2293 = vsel %vm1390, %v2174, %v2292
    %v2294 = vsel %vm1392, %v2183, %v2293
    %v2295 = vsel %vm1394, %v2192, %v2294
    %v2296 = vsel %vm1396, %v2201, %v2295
    %v2297 = vsel %vm1398, %v2210, %v2296
    %v2298 = vsel %vm1400, %v2219, %v2297
    %v2299 = vsel %vm1388, %v2237, %v2228
    %v2300 = vsel %vm1390, %v2246, %v2299
    %v2301 = vsel %vm1392, %v2255, %v2300
    %v2302 = vsel %vm1394, %v2264, %v2301
    %v2303 = vsel %vm1396, %v2273, %v2302
    %v2304 = vsel %vm1398, %v2282, %v2303
    %v2305 = vsel %vm1400, %v2291, %v2304
    %2308 = vst.msk [vmem:[#allocation5] sm:$0xff] %vm1411, %v2298
    %2309 = vst.msk [vmem:[#allocation5 + $0x8] sm:$0xff] %vm1411, %v2305
    // Predicated region
    $region22: #{feature_extractor_forward.1} parent=1 // pred_check
      _
    $region23: #{feature_extractor_forward.1} parent=1 // pred_check_branch
      %2311 = sbr.rel (0) target = $region25
    $region24: #{feature_extractor_forward.1} parent=1 // pred_region
      %s2313 = ssub.s32 4096, 4096
      %2314 = vsyncadd [#allocation4], %s2313
      %s2315 = sshll.u32 [#allocation3], 4
      %s2316 = int_to_ptr.vmem [resolvable:$true] %s2315
      %2321 = dma.vmem_to_hbm [thread:$0]  %s2316, 4096, %s5, [#allocation4], 128, 128, 8
    $region25: #{feature_extractor_forward.1} parent=1 // pred_fallthru
      _
    // Predicated region
    $region26: #{feature_extractor_forward.1} parent=1 // pred_check
      _
    $region27: #{feature_extractor_forward.1} parent=1 // pred_check_branch
      %2323 = sbr.rel (0) target = $region29
    $region28: #{feature_extractor_forward.1} parent=1 // pred_region
      %s2325 = ssub.s32 256, 256
      %2326 = vsyncadd [#allocation6], %s2325
      %s2327 = sshll.u32 [#allocation5], 4
      %s2328 = int_to_ptr.vmem [resolvable:$true] %s2327
      %2333 = dma.vmem_to_hbm [thread:$0]  %s2328, 256, %s6, [#allocation6], 128, 128, 8
    $region29: #{feature_extractor_forward.1} parent=1 // pred_fallthru
      _
    // Predicated region
    $region30: #{feature_extractor_forward.1} parent=1 // pred_check
      _
    $region31: #{feature_extractor_forward.1} parent=1 // pred_check_branch
      %2335 = sbr.rel (0) target = $region33
    $region32: #{feature_extractor_forward.1} parent=1 // pred_region
      %2336 = dma.done [#allocation4], 4096
    $region33: #{feature_extractor_forward.1} parent=1 // pred_fallthru
      _
    // Predicated region
    $region34: #{feature_extractor_forward.1} parent=1 // pred_check
      _
    $region35: #{feature_extractor_forward.1} parent=1 // pred_check_branch
      %2338 = sbr.rel (0) target = $region37
    $region36: #{feature_extractor_forward.1} parent=1 // pred_region
      %2339 = dma.done [#allocation6], 256
    $region37: #{feature_extractor_forward.1} parent=1 // pred_fallthru
      _
    %2340 = vsyncpa [#allocation4], 1
    %2341 = vsyncpa [#allocation6], 1

</llo_original>
